<compile_context>
chip_gen: v7x
topology: tpu7x:2x2x1
jax: 0.10.0
libtpu: 0.0.40
codegen_flags: <defaults>
</compile_context>

<pallas_src>
import math
import functools

import jax
import jax.numpy as jnp
from jax.experimental import pallas as pl
from jax.experimental.pallas import tpu as pltpu


def _modconv_kernel(x_ref, s_ref, w_ref, o_ref, wm_ref, *,
                    c, eps, demodulate, K, TH, Wk):
    # x_ref : (1, TH+2p, Wk+2p, I)  bf16 padded NHWC tile (row halo included)
    # s_ref : (1, I, 1)             style scale for this batch sample
    # w_ref : (K*K, I, O)           raw (unscaled) conv weight, (kh,kw)-major
    # o_ref : (1, TH*Wk, O)         output tile, row index = h*Wk + w
    # wm_ref: (K*K, I, O)           bf16 scratch: modulated+demodulated weight
    p = (K - 1) // 2

    # ---- modulate + demodulate ONCE per batch sample (f32 math) -------------
    @pl.when(pl.program_id(1) == 0)
    def _():
        wm = w_ref[...].astype(jnp.float32) * c            # EqualizedWeight
        wm = wm * s_ref[...].astype(jnp.float32)           # modulate (1,I,1)
        if demodulate:
            ss = jnp.sum(wm * wm, axis=0)                  # (I, O)  tap-sum
            ss = jnp.sum(ss, axis=0, keepdims=True)        # (1, O)  chan-sum
            wm = wm * jax.lax.rsqrt(ss + eps)[None]        # (K*K, I, O)
        wm_ref[...] = wm.astype(jnp.bfloat16)              # bf16 MXU feed

    # ---- K*K shifted bf16 matmuls, f32 accumulation --------------------------
    x_t = x_ref[0]                                         # (TH+2p, Wk+2p, I)
    ci = x_t.shape[-1]
    O = o_ref.shape[-1]
    acc = jnp.zeros((TH * Wk, O), jnp.float32)
    for kw in range(K):
        # contiguous width window; flatten (rows, Wk, I) -> (rows*Wk, I) is a
        # layout no-op because Wk is a multiple of the bf16 sublane tile (16).
        xs = x_t[:, kw:kw + Wk, :].reshape((TH + 2 * p) * Wk, ci)
        for kh in range(K):
            xwin = xs[kh * Wk: kh * Wk + TH * Wk, :]       # aligned row slice
            acc = acc + jnp.dot(xwin, wm_ref[kh * K + kw],
                                preferred_element_type=jnp.float32)
    o_ref[0] = acc.astype(o_ref.dtype)


def conv2d_weight_modulate(x, s, weight, *, demodulate=True, eps=1e-8):
    """StyleGAN2 modulated conv. x: [B,I,H,W], s: [B,I], weight: [O,I,K,K]."""
    B, I, H, W = x.shape
    O, I2, KH, KW = weight.shape
    assert I2 == I and KH == KW, "square kernel, matching in_features expected"
    K = KH
    p = (K - 1) // 2
    KK = K * K
    c = 1.0 / math.sqrt(float(I * K * K))                  # static, no sync

    # Width used inside the kernel: multiple of 16 (bf16 sublane tile) so the
    # in-kernel flatten is free; extra columns are zero and sliced off at the end.
    Wk = max(16, ((W + 15) // 16) * 16)
    Wkp = Wk + 2 * p
    out_itemsize = jnp.dtype(x.dtype).itemsize

    # ---- VMEM-budget-driven row-tile size ------------------------------------
    try:
        vmem_cap = int(pltpu.get_tpu_info().vmem_capacity_bytes)
    except Exception:
        vmem_cap = 64 * 1024 * 1024                        # v7x-safe fallback
    budget = int(vmem_cap * 0.6)

    def footprint(th):
        thh = th + 2 * p
        xb = 2 * thh * Wkp * I * 2            # bf16 x tile, double-buffered
        ob = 2 * th * Wk * O * out_itemsize   # output tile, double-buffered
        wb = 2 * KK * I * O * 4               # f32 weight (default dbuf)
        wm = KK * I * O * 2                   # bf16 modulated-weight scratch
        ac = th * Wk * O * 4                  # f32 accumulator
        tmp = thh * Wk * I * 2                # per-kw shifted slab
        return xb + ob + wb + wm + ac + tmp + 2 * I * 4

    TH = 1
    for d in range(H, 0, -1):                 # largest divisor of H that fits
        if H % d == 0 and footprint(d) <= budget:
            TH = d
            break
    n_rt = H // TH
    THh = TH + 2 * p

    # ---- layout-only wrapper work (no arithmetic) -----------------------------
    xhwc = jnp.transpose(x, (0, 2, 3, 1))                           # [B,H,W,I]
    x_pad = jnp.pad(xhwc, ((0, 0), (p, p), (p, p + Wk - W), (0, 0)))
    # overlapping row tiles (2p halo rows duplicated -> plain Blocked indexing)
    x_tiles = jnp.stack(
        [x_pad[:, r * TH: r * TH + THh] for r in range(n_rt)], axis=1)
    x_tiles = x_tiles.reshape(B * n_rt, THh, Wkp, I).astype(jnp.bfloat16)

    w_r = jnp.transpose(weight, (2, 3, 1, 0)).reshape(KK, I, O)     # (kh,kw),i,o
    s_r = s.reshape(B, I, 1).astype(jnp.float32)

    flops = 2 * B * O * I * KK * H * Wk
    bytes_accessed = (x_tiles.size * 2 + w_r.size * 4 + s_r.size * 4
                      + B * H * Wk * O * out_itemsize)

    out = pl.pallas_call(
        functools.partial(_modconv_kernel, c=c, eps=eps,
                          demodulate=demodulate, K=K, TH=TH, Wk=Wk),
        out_shape=jax.ShapeDtypeStruct((B * n_rt, TH * Wk, O), x.dtype),
        grid_spec=pltpu.PrefetchScalarGridSpec(
            num_scalar_prefetch=0,
            grid=(B, n_rt),
            in_specs=[
                pl.BlockSpec((1, THh, Wkp, I),
                             lambda b, r: (b * n_rt + r, 0, 0, 0)),   # x tile
                pl.BlockSpec((1, I, 1), lambda b, r: (b, 0, 0)),      # style
                pl.BlockSpec((KK, I, O), lambda b, r: (0, 0, 0)),     # weight
            ],
            out_specs=pl.BlockSpec((1, TH * Wk, O),
                                   lambda b, r: (b * n_rt + r, 0, 0)),
            scratch_shapes=[pltpu.VMEM((KK, I, O), jnp.bfloat16)],    # wm cache
        ),
        compiler_params=pltpu.CompilerParams(
            # row-tile axis must be sequential per sample (wm scratch reuse)
            dimension_semantics=("parallel", "arbitrary"),
            vmem_limit_bytes=int(vmem_cap * 3 // 4),
        ),
        cost_estimate=pl.CostEstimate(flops=flops, transcendentals=B * O,
                                      bytes_accessed=bytes_accessed),
    )(x_tiles, s_r, w_r)

    out = out.reshape(B, n_rt, TH, Wk, O)
    out = jnp.transpose(out, (0, 4, 1, 2, 3)).reshape(B, O, H, Wk)
    return out[:, :, :, :W]


# --------------------------- reference (plain JAX) ---------------------------
def _ref_conv2d_weight_modulate(x, s, weight, demodulate=True, eps=1e-8):
    B, I, H, W = x.shape
    O, _, K, _ = weight.shape
    p = (K - 1) // 2
    c = 1.0 / math.sqrt(float(I * K * K))
    w = weight * c
    ws = w[None] * s[:, None, :, None, None]                       # [B,O,I,K,K]
    if demodulate:
        sigma_inv = jax.lax.rsqrt(
            jnp.sum(ws ** 2, axis=(2, 3, 4), keepdims=True) + eps)
        ws = ws * sigma_inv
    xr = x.reshape(1, B * I, H, W)
    wr = ws.reshape(B * O, I, K, K)
    y = jax.lax.conv_general_dilated(
        xr, wr, window_strides=(1, 1), padding=((p, p), (p, p)),
        dimension_numbers=("NCHW", "OIHW", "NCHW"),
        feature_group_count=B)
    return y.reshape(B, O, H, W)


if __name__ == "__main__":
    key = jax.random.PRNGKey(0)
    kx, ks, kw = jax.random.split(key, 3)

    B, I, O, K, H, W = 2, 4, 8, 3, 16, 16
    x = jax.random.normal(kx, (B, I, H, W), dtype=jnp.float32)
    s = jax.random.normal(ks, (B, I), dtype=jnp.float32)
    weight = jax.random.normal(kw, (O, I, K, K), dtype=jnp.float32)

    out = conv2d_weight_modulate(x, s, weight, demodulate=True, eps=1e-8)
    out = jax.block_until_ready(out)

    ref = _ref_conv2d_weight_modulate(x, s, weight, demodulate=True, eps=1e-8)
    assert out.shape == (B, O, H, W) and out.dtype == x.dtype
    # bf16 MXU inputs with f32 accumulation -> relaxed tolerance vs f32 reference
    err = float(jnp.max(jnp.abs(out - ref)))
    assert jnp.allclose(out, ref, atol=5e-2, rtol=5e-2), err

    print("KERNEL_OK")
</pallas_src>

<mosaic_0001>
module attributes {stable_mosaic.version = 11 : i64} {
  func.func @_modconv_kernel(%arg0: i32, %arg1: i32, %arg2: memref<1x18x18x4xbf16, #tpu.memory_space<vmem>>, %arg3: memref<1x4x1xf32, #tpu.memory_space<vmem>>, %arg4: memref<9x4x8xf32, #tpu.memory_space<vmem>>, %arg5: memref<1x256x8xf32, #tpu.memory_space<vmem>>, %arg6: memref<9x4x8xbf16, #tpu.memory_space<vmem>>) attributes {dimension_semantics = [#tpu.dimension_semantics<parallel>, #tpu.dimension_semantics<arbitrary>], iteration_bounds = array<i64: 2, 1>, scalar_prefetch = 0 : i64, scratch_operands = 1 : i64, tpu.core_type = #tpu.core_type<tc>, window_params = [{transform_indices = @transform_0, window_bounds = array<i64: 1, 18, 18, 4>}, {transform_indices = @transform_1, window_bounds = array<i64: 1, 4, 1>}, {pipeline_mode = #tpu.pipeline_mode<synchronous>, transform_indices = @transform_2, window_bounds = array<i64: 9, 4, 8>}, {transform_indices = @transform_3, window_bounds = array<i64: 1, 256, 8>}]} {
    %c0_i32 = arith.constant 0 : i32
    %0 = arith.cmpi eq, %arg1, %c0_i32 : i32
    %1 = arith.extui %0 : i1 to i32
    %c0_i32_0 = arith.constant 0 : i32
    %2 = arith.cmpi ne, %1, %c0_i32_0 : i32
    scf.if %2 {
      %c0_35 = arith.constant 0 : index
      %c0_36 = arith.constant 0 : index
      %c0_37 = arith.constant 0 : index
      %60 = vector.load %arg4[%c0_35, %c0_36, %c0_37] : memref<9x4x8xf32, #tpu.memory_space<vmem>>, vector<9x4x8xf32>
      %cst_38 = arith.constant 0.166666672 : f32
      %61 = vector.broadcast %cst_38 : f32 to vector<9x4x8xf32>
      %62 = arith.mulf %60, %61 : vector<9x4x8xf32>
      %c0_39 = arith.constant 0 : index
      %c0_40 = arith.constant 0 : index
      %c0_41 = arith.constant 0 : index
      %63 = vector.load %arg3[%c0_39, %c0_40, %c0_41] : memref<1x4x1xf32, #tpu.memory_space<vmem>>, vector<1x4x1xf32>
      %64 = vector.broadcast %63 : vector<1x4x1xf32> to vector<9x4x8xf32>
      %65 = arith.mulf %62, %64 : vector<9x4x8xf32>
      %66 = arith.mulf %65, %65 : vector<9x4x8xf32>
      %cst_42 = arith.constant dense<0.000000e+00> : vector<4x8xf32>
      %67 = vector.multi_reduction <add>, %66, %cst_42 [0] : vector<9x4x8xf32> to vector<4x8xf32>
      %cst_43 = arith.constant dense<0.000000e+00> : vector<8xf32>
      %68 = vector.multi_reduction <add>, %67, %cst_43 [0] : vector<4x8xf32> to vector<8xf32>
      %69 = vector.shape_cast %68 : vector<8xf32> to vector<1x8xf32>
      %cst_44 = arith.constant 9.99999993E-9 : f32
      %70 = vector.broadcast %cst_44 : f32 to vector<1x8xf32>
      %71 = arith.addf %69, %70 : vector<1x8xf32>
      %72 = math.rsqrt %71 : vector<1x8xf32>
      %73 = vector.shape_cast %72 : vector<1x8xf32> to vector<1x1x8xf32>
      %74 = vector.broadcast %73 : vector<1x1x8xf32> to vector<9x4x8xf32>
      %75 = arith.mulf %65, %74 : vector<9x4x8xf32>
      %76 = arith.truncf %75 : vector<9x4x8xf32> to vector<9x4x8xbf16>
      %c0_45 = arith.constant 0 : index
      %c0_46 = arith.constant 0 : index
      %c0_47 = arith.constant 0 : index
      %77 = vector.load %arg6[%c0_45, %c0_46, %c0_47] : memref<9x4x8xbf16, #tpu.memory_space<vmem>>, vector<9x4x8xbf16>
      tpu.vector_store %arg6[%c0_45, %c0_46, %c0_47], %76 {strides = array<i32>} : memref<9x4x8xbf16, #tpu.memory_space<vmem>>, vector<9x4x8xbf16>,
    } else {
    }
    %c0 = arith.constant 0 : index
    %c0_1 = arith.constant 0 : index
    %c0_2 = arith.constant 0 : index
    %c0_3 = arith.constant 0 : index
    %3 = vector.load %arg2[%c0, %c0_1, %c0_2, %c0_3] : memref<1x18x18x4xbf16, #tpu.memory_space<vmem>>, vector<1x18x18x4xbf16>
    %4 = vector.shape_cast %3 : vector<1x18x18x4xbf16> to vector<18x18x4xbf16>
    %cst = arith.constant 0.000000e+00 : f32
    %5 = vector.broadcast %cst : f32 to vector<256x8xf32>
    %6 = vector.extract_strided_slice %4 {offsets = [0, 0, 0], sizes = [18, 16, 4], strides = [1, 1, 1]} : vector<18x18x4xbf16> to vector<18x16x4xbf16>
    %7 = vector.shape_cast %6 : vector<18x16x4xbf16> to vector<288x4xbf16>
    %8 = vector.extract_strided_slice %7 {offsets = [0, 0], sizes = [256, 4], strides = [1, 1]} : vector<288x4xbf16> to vector<256x4xbf16>
    %c0_4 = arith.constant 0 : index
    %c0_5 = arith.constant 0 : index
    %c0_6 = arith.constant 0 : index
    %9 = vector.load %arg6[%c0_4, %c0_5, %c0_6] : memref<9x4x8xbf16, #tpu.memory_space<vmem>>, vector<1x4x8xbf16>
    %10 = vector.shape_cast %9 : vector<1x4x8xbf16> to vector<4x8xbf16>
    %cst_7 = arith.constant dense<0.000000e+00> : vector<256x8xf32>
    %11 = tpu.matmul %8, %10, %cst_7 {dimension_numbers = #tpu.dot_dimension_numbers<[1], [0], [0], [1], [0, 0, 1, 1], [], []>} : vector<256x4xbf16>, vector<4x8xbf16>, vector<256x8xf32> -> vector<256x8xf32>
    %12 = arith.addf %5, %11 : vector<256x8xf32>
    %13 = vector.extract_strided_slice %7 {offsets = [16, 0], sizes = [256, 4], strides = [1, 1]} : vector<288x4xbf16> to vector<256x4xbf16>
    %c3 = arith.constant 3 : index
    %c0_8 = arith.constant 0 : index
    %c0_9 = arith.constant 0 : index
    %14 = vector.load %arg6[%c3, %c0_8, %c0_9] : memref<9x4x8xbf16, #tpu.memory_space<vmem>>, vector<1x4x8xbf16>
    %15 = vector.shape_cast %14 : vector<1x4x8xbf16> to vector<4x8xbf16>
    %cst_10 = arith.constant dense<0.000000e+00> : vector<256x8xf32>
    %16 = tpu.matmul %13, %15, %cst_10 {dimension_numbers = #tpu.dot_dimension_numbers<[1], [0], [0], [1], [0, 0, 1, 1], [], []>} : vector<256x4xbf16>, vector<4x8xbf16>, vector<256x8xf32> -> vector<256x8xf32>
    %17 = arith.addf %12, %16 : vector<256x8xf32>
    %18 = vector.extract_strided_slice %7 {offsets = [32, 0], sizes = [256, 4], strides = [1, 1]} : vector<288x4xbf16> to vector<256x4xbf16>
    %c6 = arith.constant 6 : index
    %c0_11 = arith.constant 0 : index
    %c0_12 = arith.constant 0 : index
    %19 = vector.load %arg6[%c6, %c0_11, %c0_12] : memref<9x4x8xbf16, #tpu.memory_space<vmem>>, vector<1x4x8xbf16>
    %20 = vector.shape_cast %19 : vector<1x4x8xbf16> to vector<4x8xbf16>
    %cst_13 = arith.constant dense<0.000000e+00> : vector<256x8xf32>
    %21 = tpu.matmul %18, %20, %cst_13 {dimension_numbers = #tpu.dot_dimension_numbers<[1], [0], [0], [1], [0, 0, 1, 1], [], []>} : vector<256x4xbf16>, vector<4x8xbf16>, vector<256x8xf32> -> vector<256x8xf32>
    %22 = arith.addf %17, %21 : vector<256x8xf32>
    %23 = vector.extract_strided_slice %4 {offsets = [0, 1, 0], sizes = [18, 16, 4], strides = [1, 1, 1]} : vector<18x18x4xbf16> to vector<18x16x4xbf16>
    %24 = vector.shape_cast %23 : vector<18x16x4xbf16> to vector<288x4xbf16>
    %25 = vector.extract_strided_slice %24 {offsets = [0, 0], sizes = [256, 4], strides = [1, 1]} : vector<288x4xbf16> to vector<256x4xbf16>
    %c1 = arith.constant 1 : index
    %c0_14 = arith.constant 0 : index
    %c0_15 = arith.constant 0 : index
    %26 = vector.load %arg6[%c1, %c0_14, %c0_15] : memref<9x4x8xbf16, #tpu.memory_space<vmem>>, vector<1x4x8xbf16>
    %27 = vector.shape_cast %26 : vector<1x4x8xbf16> to vector<4x8xbf16>
    %cst_16 = arith.constant dense<0.000000e+00> : vector<256x8xf32>
    %28 = tpu.matmul %25, %27, %cst_16 {dimension_numbers = #tpu.dot_dimension_numbers<[1], [0], [0], [1], [0, 0, 1, 1], [], []>} : vector<256x4xbf16>, vector<4x8xbf16>, vector<256x8xf32> -> vector<256x8xf32>
    %29 = arith.addf %22, %28 : vector<256x8xf32>
    %30 = vector.extract_strided_slice %24 {offsets = [16, 0], sizes = [256, 4], strides = [1, 1]} : vector<288x4xbf16> to vector<256x4xbf16>
    %c4 = arith.constant 4 : index
    %c0_17 = arith.constant 0 : index
    %c0_18 = arith.constant 0 : index
    %31 = vector.load %arg6[%c4, %c0_17, %c0_18] : memref<9x4x8xbf16, #tpu.memory_space<vmem>>, vector<1x4x8xbf16>
    %32 = vector.shape_cast %31 : vector<1x4x8xbf16> to vector<4x8xbf16>
    %cst_19 = arith.constant dense<0.000000e+00> : vector<256x8xf32>
    %33 = tpu.matmul %30, %32, %cst_19 {dimension_numbers = #tpu.dot_dimension_numbers<[1], [0], [0], [1], [0, 0, 1, 1], [], []>} : vector<256x4xbf16>, vector<4x8xbf16>, vector<256x8xf32> -> vector<256x8xf32>
    %34 = arith.addf %29, %33 : vector<256x8xf32>
    %35 = vector.extract_strided_slice %24 {offsets = [32, 0], sizes = [256, 4], strides = [1, 1]} : vector<288x4xbf16> to vector<256x4xbf16>
    %c7 = arith.constant 7 : index
    %c0_20 = arith.constant 0 : index
    %c0_21 = arith.constant 0 : index
    %36 = vector.load %arg6[%c7, %c0_20, %c0_21] : memref<9x4x8xbf16, #tpu.memory_space<vmem>>, vector<1x4x8xbf16>
    %37 = vector.shape_cast %36 : vector<1x4x8xbf16> to vector<4x8xbf16>
    %cst_22 = arith.constant dense<0.000000e+00> : vector<256x8xf32>
    %38 = tpu.matmul %35, %37, %cst_22 {dimension_numbers = #tpu.dot_dimension_numbers<[1], [0], [0], [1], [0, 0, 1, 1], [], []>} : vector<256x4xbf16>, vector<4x8xbf16>, vector<256x8xf32> -> vector<256x8xf32>
    %39 = arith.addf %34, %38 : vector<256x8xf32>
    %40 = vector.extract_strided_slice %4 {offsets = [0, 2, 0], sizes = [18, 16, 4], strides = [1, 1, 1]} : vector<18x18x4xbf16> to vector<18x16x4xbf16>
    %41 = vector.shape_cast %40 : vector<18x16x4xbf16> to vector<288x4xbf16>
    %42 = vector.extract_strided_slice %41 {offsets = [0, 0], sizes = [256, 4], strides = [1, 1]} : vector<288x4xbf16> to vector<256x4xbf16>
    %c2 = arith.constant 2 : index
    %c0_23 = arith.constant 0 : index
    %c0_24 = arith.constant 0 : index
    %43 = vector.load %arg6[%c2, %c0_23, %c0_24] : memref<9x4x8xbf16, #tpu.memory_space<vmem>>, vector<1x4x8xbf16>
    %44 = vector.shape_cast %43 : vector<1x4x8xbf16> to vector<4x8xbf16>
    %cst_25 = arith.constant dense<0.000000e+00> : vector<256x8xf32>
    %45 = tpu.matmul %42, %44, %cst_25 {dimension_numbers = #tpu.dot_dimension_numbers<[1], [0], [0], [1], [0, 0, 1, 1], [], []>} : vector<256x4xbf16>, vector<4x8xbf16>, vector<256x8xf32> -> vector<256x8xf32>
    %46 = arith.addf %39, %45 : vector<256x8xf32>
    %47 = vector.extract_strided_slice %41 {offsets = [16, 0], sizes = [256, 4], strides = [1, 1]} : vector<288x4xbf16> to vector<256x4xbf16>
    %c5 = arith.constant 5 : index
    %c0_26 = arith.constant 0 : index
    %c0_27 = arith.constant 0 : index
    %48 = vector.load %arg6[%c5, %c0_26, %c0_27] : memref<9x4x8xbf16, #tpu.memory_space<vmem>>, vector<1x4x8xbf16>
    %49 = vector.shape_cast %48 : vector<1x4x8xbf16> to vector<4x8xbf16>
    %cst_28 = arith.constant dense<0.000000e+00> : vector<256x8xf32>
    %50 = tpu.matmul %47, %49, %cst_28 {dimension_numbers = #tpu.dot_dimension_numbers<[1], [0], [0], [1], [0, 0, 1, 1], [], []>} : vector<256x4xbf16>, vector<4x8xbf16>, vector<256x8xf32> -> vector<256x8xf32>
    %51 = arith.addf %46, %50 : vector<256x8xf32>
    %52 = vector.extract_strided_slice %41 {offsets = [32, 0], sizes = [256, 4], strides = [1, 1]} : vector<288x4xbf16> to vector<256x4xbf16>
    %c8 = arith.constant 8 : index
    %c0_29 = arith.constant 0 : index
    %c0_30 = arith.constant 0 : index
    %53 = vector.load %arg6[%c8, %c0_29, %c0_30] : memref<9x4x8xbf16, #tpu.memory_space<vmem>>, vector<1x4x8xbf16>
    %54 = vector.shape_cast %53 : vector<1x4x8xbf16> to vector<4x8xbf16>
    %cst_31 = arith.constant dense<0.000000e+00> : vector<256x8xf32>
    %55 = tpu.matmul %52, %54, %cst_31 {dimension_numbers = #tpu.dot_dimension_numbers<[1], [0], [0], [1], [0, 0, 1, 1], [], []>} : vector<256x4xbf16>, vector<4x8xbf16>, vector<256x8xf32> -> vector<256x8xf32>
    %56 = arith.addf %51, %55 : vector<256x8xf32>
    %c0_32 = arith.constant 0 : index
    %c0_33 = arith.constant 0 : index
    %c0_34 = arith.constant 0 : index
    %57 = vector.load %arg5[%c0_32, %c0_33, %c0_34] : memref<1x256x8xf32, #tpu.memory_space<vmem>>, vector<1x256x8xf32>
    %58 = vector.shape_cast %57 : vector<1x256x8xf32> to vector<256x8xf32>
    %59 = vector.shape_cast %56 : vector<256x8xf32> to vector<1x256x8xf32>
    tpu.vector_store %arg5[%c0_32, %c0_33, %c0_34], %59 {strides = array<i32>} : memref<1x256x8xf32, #tpu.memory_space<vmem>>, vector<1x256x8xf32>,
    return
  }
  func.func @transform_0(%arg0: i32, %arg1: i32) -> (i32, i32, i32, i32) {
    %c1_i32 = arith.constant 1 : i32
    %0 = arith.muli %arg0, %c1_i32 : i32
    %1 = arith.addi %0, %arg1 : i32
    %c0_i32 = arith.constant 0 : i32
    %c0_i32_0 = arith.constant 0 : i32
    %c0_i32_1 = arith.constant 0 : i32
    %c0_i32_2 = arith.constant 0 : i32
    return %1, %c0_i32, %c0_i32_0, %c0_i32_1 : i32, i32, i32, i32
  }
  func.func @transform_1(%arg0: i32, %arg1: i32) -> (i32, i32, i32) {
    %c0_i32 = arith.constant 0 : i32
    %c0_i32_0 = arith.constant 0 : i32
    %c0_i32_1 = arith.constant 0 : i32
    return %arg0, %c0_i32, %c0_i32_0 : i32, i32, i32
  }
  func.func @transform_2(%arg0: i32, %arg1: i32) -> (i32, i32, i32) {
    %c0_i32 = arith.constant 0 : i32
    %c0_i32_0 = arith.constant 0 : i32
    %c0_i32_1 = arith.constant 0 : i32
    %c0_i32_2 = arith.constant 0 : i32
    return %c0_i32, %c0_i32_0, %c0_i32_1 : i32, i32, i32
  }
  func.func @transform_3(%arg0: i32, %arg1: i32) -> (i32, i32, i32) {
    %c1_i32 = arith.constant 1 : i32
    %0 = arith.muli %arg0, %c1_i32 : i32
    %1 = arith.addi %0, %arg1 : i32
    %c0_i32 = arith.constant 0 : i32
    %c0_i32_0 = arith.constant 0 : i32
    %c0_i32_1 = arith.constant 0 : i32
    return %1, %c0_i32, %c0_i32_0 : i32, i32, i32
  }
}

</mosaic_0001>

<llo_original>
// kernel: tpu_custom_call.1
$region0: #{tpu_custom_call.1}
  #allocation0 [shape = 'u32[]', space=smem, size = 0x4, offset = 0x4, fixed_abs, tag = 'smem constant byte address 0x4 - core index']
  #allocation1 [shape = 'u32[144,128]{1,0:T(1,128)}', space=vmem, size = 0x12000, scoped, tag = 'internal scratch']
  #allocation2 [shape = 'bf16[9,4,8]{2,1,0:T(4,128)(2,1)}', space=vmem, size = 0x2400, scoped, tag = 'scratch operand']
  %s0 = inlined_call_operand.vmem [shape: bf16[2,18,18,4], index: 0, kind: input, shape index: {}]
  %s1 = inlined_call_operand.vmem [shape: f32[2,4,1], index: 1, kind: input, shape index: {}]
  %s2 = inlined_call_operand.vmem [shape: f32[9,4,8], index: 2, kind: input, shape index: {}]
  %s3 = inlined_call_operand.vmem [shape: f32[2,256,8], index: 3, kind: output, shape index: {}]
  %s4 = sld [smem:[#allocation0]]
  $region49: #{tpu_custom_call.1} parent=0
    _
  %s6 = ssub.s32 1, %s4
  %s7 = scalar_select 0, %s6, %s4
  loop: start=0, step=1, limit=4
  $region2: #{tpu_custom_call.1} parent=0 // loop_pre_header
    _
  $region3: #{tpu_custom_call.1} parent=0 // loop_header
    %s9 = sphi 0, %s13
    %p10 = scmp.ge.s32.totalorder %s9, 4
    %s16 = sphi 0, %s28
    %s17 = sphi 0, %s24
    %s18 = sphi 0, %s16
    %s19 = sphi 0, %s17
    %s20 = sphi 0, %s18
    %s21 = sphi 0, %s19
    %s33 = sphi 0, %s35
    %s36 = sphi 0, %s33
    %s37 = sphi 0, %s36
    %s53 = sphi 0, %s37
    %s59 = sphi 0, %s61
    %s62 = sphi 0, %s59
    %s63 = sphi 0, %s62
    %s79 = sphi 0, %s63
    %s83 = sphi 0, %s83
    %s85 = sphi 0, %s83
    %s86 = sphi 0, %s85
    %s100 = sphi 0, %s86
    %s108 = sphi 0, %s110
    %s111 = sphi 0, %s108
    %s112 = sphi 0, %s111
    %s128 = sphi 0, %s112
  $region4: #{tpu_custom_call.1} parent=0 // loop_header_branch
    %12 = sbr.rel (%p10) target = $region8
  $region5: #{tpu_custom_call.1} parent=0 // loop_body
    %s14 = ssub.s32 %s9, 1
    %s15 = ssub.s32 %s9, 2
    %s22 = sadd.s32 1, %s17
    %p23 = scmp.ge.s32.totalorder %s22, 1
    %s24 = scalar_select %p23, 0, %s22
    %s25 = sadd.s32 1, %s16
    %s26 = scalar_select %p23, %s25, %s16
    %p27 = scmp.ge.s32.totalorder %s26, 2
    %s28 = scalar_select %p27, 0, %s26
    %s29 = sadd.s32 %s16, %s17
    %s30 = sadd.s32 %s28, %s24
    %s31 = ssub.s32 %s29, %s30
    %p32 = scmp.eq.s32.totalorder %s31, 0
    %s34 = sadd.s32 %s33, 1
    %s35 = scalar_select %p32, %s33, %s34
    %p38 = pneg %p32
    %p39 = scmp.eq.s32.totalorder %s9, 1
    %p40 = por %p38, %p39
    %p41 = scmp.ne.s32.totalorder %s33, %s36
    %p42 = scmp.eq.s32.totalorder %s9, 0
    %p43 = por %p41, %p42
    %p44 = scmp.ne.s32.totalorder %s33, %s36
    %p45 = scmp.eq.s32.totalorder %s14, 1
    %p46 = por %p44, %p45
    %p47 = scmp.ne.s32.totalorder %s36, %s37
    %p48 = scmp.eq.s32.totalorder %s14, 0
    %p49 = por %p47, %p48
    %p50 = scmp.ne.s32.totalorder %s36, %s37
    %p51 = scmp.eq.s32.totalorder %s15, 1
    %p52 = por %p50, %p51
    %p54 = scmp.ne.s32.totalorder %s37, %s53
    %p55 = scmp.eq.s32.totalorder %s15, 0
    %p56 = por %p54, %p55
    %s57 = ssub.s32 %s16, %s28
    %p58 = scmp.eq.s32.totalorder %s57, 0
    %s60 = sadd.s32 %s59, 1
    %s61 = scalar_select %p58, %s59, %s60
    %p64 = pneg %p58
    %p65 = scmp.eq.s32.totalorder %s9, 1
    %p66 = por %p64, %p65
    %p67 = scmp.ne.s32.totalorder %s59, %s62
    %p68 = scmp.eq.s32.totalorder %s9, 0
    %p69 = por %p67, %p68
    %p70 = scmp.ne.s32.totalorder %s59, %s62
    %p71 = scmp.eq.s32.totalorder %s14, 1
    %p72 = por %p70, %p71
    %p73 = scmp.ne.s32.totalorder %s62, %s63
    %p74 = scmp.eq.s32.totalorder %s14, 0
    %p75 = por %p73, %p74
    %p76 = scmp.ne.s32.totalorder %s62, %s63
    %p77 = scmp.eq.s32.totalorder %s15, 1
    %p78 = por %p76, %p77
    %p80 = scmp.ne.s32.totalorder %s63, %s79
    %p81 = scmp.eq.s32.totalorder %s15, 0
    %p82 = por %p80, %p81
    %s84 = sadd.s32 %s83, 1
    %p87 = scmp.eq.s32.totalorder %s9, 1
    %p88 = scmp.ne.s32.totalorder %s83, %s85
    %p89 = scmp.eq.s32.totalorder %s9, 0
    %p90 = por %p88, %p89
    %p91 = scmp.ne.s32.totalorder %s83, %s85
    %p92 = scmp.eq.s32.totalorder %s14, 1
    %p93 = por %p91, %p92
    %p94 = scmp.ne.s32.totalorder %s85, %s86
    %p95 = scmp.eq.s32.totalorder %s14, 0
    %p96 = por %p94, %p95
    %p97 = scmp.ne.s32.totalorder %s85, %s86
    %p98 = scmp.eq.s32.totalorder %s15, 1
    %p99 = por %p97, %p98
    %p101 = scmp.ne.s32.totalorder %s86, %s100
    %p102 = scmp.eq.s32.totalorder %s15, 0
    %p103 = por %p101, %p102
    %s104 = sadd.s32 %s16, %s17
    %s105 = sadd.s32 %s28, %s24
    %s106 = ssub.s32 %s104, %s105
    %p107 = scmp.eq.s32.totalorder %s106, 0
    %s109 = sadd.s32 %s108, 1
    %s110 = scalar_select %p107, %s108, %s109
    %p113 = pneg %p107
    %p114 = scmp.eq.s32.totalorder %s9, 1
    %p115 = por %p113, %p114
    %p116 = scmp.ne.s32.totalorder %s108, %s111
    %p117 = scmp.eq.s32.totalorder %s9, 0
    %p118 = por %p116, %p117
    %p119 = scmp.ne.s32.totalorder %s108, %s111
    %p120 = scmp.eq.s32.totalorder %s14, 1
    %p121 = por %p119, %p120
    %p122 = scmp.ne.s32.totalorder %s111, %s112
    %p123 = scmp.eq.s32.totalorder %s14, 0
    %p124 = por %p122, %p123
    %p125 = scmp.ne.s32.totalorder %s111, %s112
    %p126 = scmp.eq.s32.totalorder %s15, 1
    %p127 = por %p125, %p126
    %p129 = scmp.ne.s32.totalorder %s112, %s128
    %p130 = scmp.eq.s32.totalorder %s15, 0
    %p131 = por %p129, %p130
    %p132 = scmp.le.s32.totalorder 1, %s9
    %p133 = scmp.lt.s32.totalorder %s9, 3
    %p134 = pnand %p132, %p133
    %p135 = pneg %p134
    // Predicated region
    $region9: #{tpu_custom_call.1} parent=5 // pred_check
      _
    $region10: #{tpu_custom_call.1} parent=5 // pred_check_branch
      %137 = sbr.rel (%p134) target = $region12
    $region11: #{tpu_custom_call.1} parent=5 // pred_region
      %s138 = ssub.s32 %s9, 1
      // Predicated region
      $region13: #{tpu_custom_call.1} parent=11 // pred_check
        %p139 = pneg %p96
      $region14: #{tpu_custom_call.1} parent=11 // pred_check_branch
        %141 = sbr.rel (%p139) target = $region16
      $region15: #{tpu_custom_call.1} parent=11 // pred_region
        _
      $region16: #{tpu_custom_call.1} parent=11 // pred_fallthru
        _
    $region12: #{tpu_custom_call.1} parent=5 // pred_fallthru
      _
    %p142 = scmp.lt.s32.totalorder %s9, 2
    // Predicated region
    $region17: #{tpu_custom_call.1} parent=5 // pred_check
      %p143 = pneg %p142
    $region18: #{tpu_custom_call.1} parent=5 // pred_check_branch
      %145 = sbr.rel (%p143) target = $region20
    $region19: #{tpu_custom_call.1} parent=5 // pred_region
      // Predicated region
      $region21: #{tpu_custom_call.1} parent=19 // pred_check
        %p146 = pneg %p43
      $region22: #{tpu_custom_call.1} parent=19 // pred_check_branch
        %148 = sbr.rel (%p146) target = $region24
      $region23: #{tpu_custom_call.1} parent=19 // pred_region
        %s149 = sadd.s32 %s16, %s17
        %p150 = scmp.lt.s32.totalorder %s149, 1
        %s151 = scalar_select %p150, %s149, 1
        %s152 = smul.addr %s151, 54
        %s153 = smul.addr %s152, 4
        %s154 = scalar_lea.vmem %s0, %s153
        %s155 = sadd.s32 %s16, %s17
      $region24: #{tpu_custom_call.1} parent=19 // pred_fallthru
        _
      // Predicated region
      $region25: #{tpu_custom_call.1} parent=19 // pred_check
        %p156 = pneg %p69
      $region26: #{tpu_custom_call.1} parent=19 // pred_check_branch
        %158 = sbr.rel (%p156) target = $region28
      $region27: #{tpu_custom_call.1} parent=19 // pred_region
        %p159 = scmp.lt.s32.totalorder %s16, 1
        %s160 = scalar_select %p159, %s16, 1
        %s161 = smul.addr %s160, 4
        %s162 = scalar_lea.vmem %s1, %s161
      $region28: #{tpu_custom_call.1} parent=19 // pred_fallthru
        _
    $region20: #{tpu_custom_call.1} parent=5 // pred_fallthru
      _
    %p163 = scmp.le.s32.totalorder 1, %s9
    %p164 = scmp.lt.s32.totalorder %s9, 3
    %p165 = pnand %p163, %p164
    %p166 = pneg %p165
    // Predicated region
    $region29: #{tpu_custom_call.1} parent=5 // pred_check
      _
    $region30: #{tpu_custom_call.1} parent=5 // pred_check_branch
      %168 = sbr.rel (%p165) target = $region32
    $region31: #{tpu_custom_call.1} parent=5 // pred_region
      %s169 = ssub.s32 %s9, 1
      %s170 = sadd.s32 %s18, %s19
      %p171 = scmp.lt.s32.totalorder %s170, 1
      %s172 = scalar_select %p171, %s170, 1
      %s173 = smul.addr %s172, 54
      %s174 = smul.addr %s173, 4
      %s175 = scalar_lea.vmem %s0, %s174
      %p176 = pneg %p49
      %p177 = pneg %p46
      %p178 = scmp.lt.s32.totalorder %s18, 1
      %s179 = scalar_select %p178, %s18, 1
      %s180 = smul.addr %s179, 4
      %s181 = scalar_lea.vmem %s1, %s180
      %p182 = pneg %p75
      %p183 = pneg %p72
      %p184 = pneg %p96
      %p185 = pneg %p93
      %p186 = pneg %p124
      %p187 = pneg %p121
      %s188 = sadd.s32 %s18, %s19
      %p189 = scmp.lt.s32.totalorder %s188, 1
      %s190 = scalar_select %p189, %s188, 1
      %s191 = smul.addr %s190, 32
      %s192 = smul.addr %s191, 8
      %s193 = scalar_lea.vmem %s3, %s192
      %s194 = sadd.s32 %s18, %s19
      %p195 = scmp.lt.s32.totalorder %s194, 1
      %s196 = scalar_select %p195, %s194, 1
      %s197 = smul.addr %s196, 54
      %s198 = smul.addr %s197, 4
      %s199 = scalar_lea.vmem %s0, %s198
      %s200 = sadd.s32 %s18, %s19
      %p201 = scmp.lt.s32.totalorder %s18, 1
      %s202 = scalar_select %p201, %s18, 1
      %s203 = smul.addr %s202, 4
      %s204 = scalar_lea.vmem %s1, %s203
      %s205 = sadd.s32 %s18, %s19
      %p206 = scmp.lt.s32.totalorder %s205, 1
      %s207 = scalar_select %p206, %s205, 1
      %s208 = smul.addr %s207, 32
      %s209 = smul.addr %s208, 8
      %s210 = scalar_lea.vmem %s3, %s209
      %s211 = sadd.s32 %s18, %s19
      %p213 = scmp.eq.s32.totalorder %s19, 0
      // Predicated region
      $region33: #{tpu_custom_call.1} parent=31 // pred_check
        %p214 = pneg %p213
      $region34: #{tpu_custom_call.1} parent=31 // pred_check_branch
        %216 = sbr.rel (%p214) target = $region36
      $region35: #{tpu_custom_call.1} parent=31 // pred_region
        %v217 = vld [vmem:[%s2] sm:$0xf]
        %v218 = vld [vmem:[%s2 + $0x4] sm:$0xf]
        %v219 = vld [vmem:[%s2 + $0x8] sm:$0xf]
        %v220 = vld [vmem:[%s2 + $0xc] sm:$0xf]
        %v221 = vld [vmem:[%s2 + $0x10] sm:$0xf]
        %v222 = vld [vmem:[%s2 + $0x14] sm:$0xf]
        %v223 = vld [vmem:[%s2 + $0x18] sm:$0xf]
        %v224 = vld [vmem:[%s2 + $0x1c] sm:$0xf]
        %v225 = vld [vmem:[%s2 + $0x20] sm:$0xf]
        %v226 = vmul.f32 %v217, 0.16666667
        %v227 = vmul.f32 %v218, 0.16666667
        %v228 = vmul.f32 %v219, 0.16666667
        %v229 = vmul.f32 %v220, 0.16666667
        %v230 = vmul.f32 %v221, 0.16666667
        %v231 = vmul.f32 %v222, 0.16666667
        %v232 = vmul.f32 %v223, 0.16666667
        %v233 = vmul.f32 %v224, 0.16666667
        %v234 = vmul.f32 %v225, 0.16666667
        %v235 = vld [vmem:[%s204] sm:$0xf]
        %237 = vset.pattern.permute.xlu0 0
        %238 = vperm.xlu0 %237, %v235
        %v239 = vpop.permute.xlu0 %238
        %v241 = vmul.f32 %v226, %v239
        %v242 = vmul.f32 %v227, %v239
        %v243 = vmul.f32 %v228, %v239
        %v244 = vmul.f32 %v229, %v239
        %v245 = vmul.f32 %v230, %v239
        %v246 = vmul.f32 %v231, %v239
        %v247 = vmul.f32 %v232, %v239
        %v248 = vmul.f32 %v233, %v239
        %v249 = vmul.f32 %v234, %v239
        %v250 = vmul.f32 %v241, %v241
        %v251 = vmul.f32 %v242, %v242
        %v252 = vmul.f32 %v243, %v243
        %v253 = vmul.f32 %v244, %v244
        %v254 = vmul.f32 %v245, %v245
        %v255 = vmul.f32 %v246, %v246
        %v256 = vmul.f32 %v247, %v247
        %v257 = vmul.f32 %v248, %v248
        %v258 = vmul.f32 %v249, %v249
        %vm259 = vcmask 60416
        %v260 = vsel %vm259, %v250, 0.0
        %v261 = vsel %vm259, %v251, 0.0
        %v262 = vadd.f32 %v260, %v261
        %v263 = vsel %vm259, %v252, 0.0
        %v264 = vadd.f32 %v262, %v263
        %v265 = vsel %vm259, %v253, 0.0
        %v266 = vadd.f32 %v264, %v265
        %v267 = vsel %vm259, %v254, 0.0
        %v268 = vadd.f32 %v266, %v267
        %v269 = vsel %vm259, %v255, 0.0
        %v270 = vadd.f32 %v268, %v269
        %v271 = vsel %vm259, %v256, 0.0
        %v272 = vadd.f32 %v270, %v271
        %v273 = vsel %vm259, %v257, 0.0
        %v274 = vadd.f32 %v272, %v273
        %v275 = vsel %vm259, %v258, 0.0
        %v276 = vadd.f32 %v274, %v275
        %v277 = vsel %vm259, %v276, 0.0
        %v278 = vrot.slane %v277, 4
        %v279 = vadd.f32 %v277, %v278
        %v280 = vrot.slane %v279, 2
        %v281 = vadd.f32 %v279, %v280
        %v282 = vrot.slane %v281, 1
        %v283 = vadd.f32 %v281, %v282
        %v284 = vadd.f32 %v283, 1e-08
        %v285 = vrsqrt.pop %v284
        %v286 = vmul.f32 %v241, %v285
        %v287 = vmul.f32 %v242, %v285
        %v288 = vmul.f32 %v243, %v285
        %v289 = vmul.f32 %v244, %v285
        %v290 = vmul.f32 %v245, %v285
        %v291 = vmul.f32 %v246, %v285
        %v292 = vmul.f32 %v247, %v285
        %v293 = vmul.f32 %v248, %v285
        %v294 = vmul.f32 %v249, %v285
        %v295 = vpack.c.bf16 %v286, %v286
        %v296 = vpack.c.bf16 %v287, %v287
        %v297 = vpack.c.bf16 %v288, %v288
        %v298 = vpack.c.bf16 %v289, %v289
        %v299 = vpack.c.bf16 %v290, %v290
        %v300 = vpack.c.bf16 %v291, %v291
        %v301 = vpack.c.bf16 %v292, %v292
        %v302 = vpack.c.bf16 %v293, %v293
        %v303 = vpack.c.bf16 %v294, %v294
        %vm304 = vcmask 58368
        %305 = vst.msk [vmem:[#allocation2] sm:$0x3] %vm304, %v295
        %306 = vst.msk [vmem:[#allocation2 + $0x2] sm:$0x3] %vm304, %v296
        %307 = vst.msk [vmem:[#allocation2 + $0x4] sm:$0x3] %vm304, %v297
        %308 = vst.msk [vmem:[#allocation2 + $0x6] sm:$0x3] %vm304, %v298
        %309 = vst.msk [vmem:[#allocation2 + $0x8] sm:$0x3] %vm304, %v299
        %310 = vst.msk [vmem:[#allocation2 + $0xa] sm:$0x3] %vm304, %v300
        %311 = vst.msk [vmem:[#allocation2 + $0xc] sm:$0x3] %vm304, %v301
        %312 = vst.msk [vmem:[#allocation2 + $0xe] sm:$0x3] %vm304, %v302
        %313 = vst.msk [vmem:[#allocation2 + $0x10] sm:$0x3] %vm304, %v303
      $region36: #{tpu_custom_call.1} parent=31 // pred_fallthru
        _
      %v314 = vld [vmem:[%s199] sm:$0xf]
      %v315 = vld [vmem:[%s199 + $0x4] sm:$0xf]
      %v316 = vld [vmem:[%s199 + $0x8] sm:$0x1]
      %v317 = vld [vmem:[%s199 + $0xc] sm:$0xf]
      %v318 = vld [vmem:[%s199 + $0x10] sm:$0xf]
      %v319 = vld [vmem:[%s199 + $0x14] sm:$0x1]
      %v320 = vld [vmem:[%s199 + $0x18] sm:$0xf]
      %v321 = vld [vmem:[%s199 + $0x1c] sm:$0xf]
      %v322 = vld [vmem:[%s199 + $0x20] sm:$0x1]
      %v323 = vld [vmem:[%s199 + $0x24] sm:$0xf]
      %v324 = vld [vmem:[%s199 + $0x28] sm:$0xf]
      %v325 = vld [vmem:[%s199 + $0x2c] sm:$0x1]
      %v326 = vld [vmem:[%s199 + $0x30] sm:$0xf]
      %v327 = vld [vmem:[%s199 + $0x34] sm:$0xf]
      %v328 = vld [vmem:[%s199 + $0x38] sm:$0x1]
      %v329 = vld [vmem:[%s199 + $0x3c] sm:$0xf]
      %v330 = vld [vmem:[%s199 + $0x40] sm:$0xf]
      %v331 = vld [vmem:[%s199 + $0x44] sm:$0x1]
      %v332 = vld [vmem:[%s199 + $0x48] sm:$0xf]
      %v333 = vld [vmem:[%s199 + $0x4c] sm:$0xf]
      %v334 = vld [vmem:[%s199 + $0x50] sm:$0x1]
      %v335 = vld [vmem:[%s199 + $0x54] sm:$0xf]
      %v336 = vld [vmem:[%s199 + $0x58] sm:$0xf]
      %v337 = vld [vmem:[%s199 + $0x5c] sm:$0x1]
      %v338 = vld [vmem:[%s199 + $0x60] sm:$0xf]
      %v339 = vld [vmem:[%s199 + $0x64] sm:$0xf]
      %v340 = vld [vmem:[%s199 + $0x68] sm:$0x1]
      %v341 = vld [vmem:[%s199 + $0x6c] sm:$0xf]
      %v342 = vld [vmem:[%s199 + $0x70] sm:$0xf]
      %v343 = vld [vmem:[%s199 + $0x74] sm:$0x1]
      %v344 = vld [vmem:[%s199 + $0x78] sm:$0xf]
      %v345 = vld [vmem:[%s199 + $0x7c] sm:$0xf]
      %v346 = vld [vmem:[%s199 + $0x80] sm:$0x1]
      %v347 = vld [vmem:[%s199 + $0x84] sm:$0xf]
      %v348 = vld [vmem:[%s199 + $0x88] sm:$0xf]
      %v349 = vld [vmem:[%s199 + $0x8c] sm:$0x1]
      %v350 = vld [vmem:[%s199 + $0x90] sm:$0xf]
      %v351 = vld [vmem:[%s199 + $0x94] sm:$0xf]
      %v352 = vld [vmem:[%s199 + $0x98] sm:$0x1]
      %v353 = vld [vmem:[%s199 + $0x9c] sm:$0xf]
      %v354 = vld [vmem:[%s199 + $0xa0] sm:$0xf]
      %v355 = vld [vmem:[%s199 + $0xa4] sm:$0x1]
      %v356 = vld [vmem:[%s199 + $0xa8] sm:$0xf]
      %v357 = vld [vmem:[%s199 + $0xac] sm:$0xf]
      %v358 = vld [vmem:[%s199 + $0xb0] sm:$0x1]
      %v359 = vld [vmem:[%s199 + $0xb4] sm:$0xf]
      %v360 = vld [vmem:[%s199 + $0xb8] sm:$0xf]
      %v361 = vld [vmem:[%s199 + $0xbc] sm:$0x1]
      %v362 = vld [vmem:[%s199 + $0xc0] sm:$0xf]
      %v363 = vld [vmem:[%s199 + $0xc4] sm:$0xf]
      %v364 = vld [vmem:[%s199 + $0xc8] sm:$0x1]
      %v365 = vld [vmem:[%s199 + $0xcc] sm:$0xf]
      %v366 = vld [vmem:[%s199 + $0xd0] sm:$0xf]
      %v367 = vld [vmem:[%s199 + $0xd4] sm:$0x1]
      %v368 = vld [vmem:[#allocation2] sm:$0x3]
      %s369 = scalar_lea.vmem [#allocation2], 6
      %v370 = vld [vmem:[%s369] sm:$0x3]
      %v403 = vunpack.c.l.b16 %v317
      %v404 = vunpack.c.l.b16 %v318
      %v405 = vunpack.c.l.b16 %v320
      %v406 = vunpack.c.l.b16 %v321
      %v407 = vunpack.c.l.b16 %v323
      %v408 = vunpack.c.l.b16 %v324
      %v409 = vunpack.c.l.b16 %v326
      %v410 = vunpack.c.l.b16 %v327
      %v411 = vunpack.c.l.b16 %v329
      %v412 = vunpack.c.l.b16 %v330
      %v413 = vunpack.c.l.b16 %v332
      %v414 = vunpack.c.l.b16 %v333
      %v415 = vunpack.c.l.b16 %v335
      %v416 = vunpack.c.l.b16 %v336
      %v417 = vunpack.c.l.b16 %v338
      %v418 = vunpack.c.l.b16 %v339
      %v419 = vunpack.c.l.b16 %v341
      %v420 = vunpack.c.l.b16 %v342
      %v421 = vunpack.c.l.b16 %v344
      %v422 = vunpack.c.l.b16 %v345
      %v423 = vunpack.c.l.b16 %v347
      %v424 = vunpack.c.l.b16 %v348
      %v425 = vunpack.c.l.b16 %v350
      %v426 = vunpack.c.l.b16 %v351
      %v427 = vunpack.c.l.b16 %v353
      %v428 = vunpack.c.l.b16 %v354
      %v429 = vunpack.c.l.b16 %v356
      %v430 = vunpack.c.l.b16 %v357
      %v431 = vunpack.c.l.b16 %v359
      %v432 = vunpack.c.l.b16 %v360
      %v433 = vunpack.c.l.b16 %v362
      %v434 = vunpack.c.l.b16 %v363
      %v435 = vpack.c.b16 %v404, %v403
      %v436 = vpack.c.b16 %v406, %v405
      %v437 = vpack.c.b16 %v408, %v407
      %v438 = vpack.c.b16 %v410, %v409
      %v439 = vpack.c.b16 %v412, %v411
      %v440 = vpack.c.b16 %v414, %v413
      %v441 = vpack.c.b16 %v416, %v415
      %v442 = vpack.c.b16 %v418, %v417
      %v443 = vpack.c.b16 %v420, %v419
      %v444 = vpack.c.b16 %v422, %v421
      %v445 = vpack.c.b16 %v424, %v423
      %v446 = vpack.c.b16 %v426, %v425
      %v447 = vpack.c.b16 %v428, %v427
      %v448 = vpack.c.b16 %v430, %v429
      %v449 = vpack.c.b16 %v432, %v431
      %v450 = vpack.c.b16 %v434, %v433
      %vm451 = vcmask 31744
      %v453 = vsel %vm451, %v435, 0
      %v456 = vsel %vm451, %v436, 0
      %v459 = vsel %vm451, %v437, 0
      %v462 = vsel %vm451, %v438, 0
      %v465 = vsel %vm451, %v439, 0
      %v468 = vsel %vm451, %v440, 0
      %v471 = vsel %vm451, %v441, 0
      %v474 = vsel %vm451, %v442, 0
      %v477 = vsel %vm451, %v443, 0
      %v480 = vsel %vm451, %v444, 0
      %v483 = vsel %vm451, %v445, 0
      %v486 = vsel %vm451, %v446, 0
      %v489 = vsel %vm451, %v447, 0
      %v492 = vsel %vm451, %v448, 0
      %v495 = vsel %vm451, %v449, 0
      %v498 = vsel %vm451, %v450, 0
      %vm500 = vcmask 1041408
      %v502 = vsel %vm500, %v370, 0
      %504 = vmatprep.subr.bf16.mxu0 0
      %505 = vmatpush1.bf16.msra.mxu0 %v502
      %506 = vmatprep.subr.bf16.mxu0 0
      %507 = vmatpush1.bf16.msra.mxu0 0
      %508 = vmatprep.subr.bf16.mxu0 0
      %509 = vmatpush1.bf16.msra.mxu0 0
      %510 = vmatprep.subr.bf16.mxu0 0
      %511 = vmatpush1.bf16.msra.mxu0 0
      %512 = vmatprep.subr.bf16.mxu0 0
      %513 = vmatpush1.bf16.msra.mxu0 0
      %514 = vmatprep.subr.bf16.mxu0 0
      %515 = vmatpush1.bf16.msra.mxu0 0
      %516 = vmatprep.subr.bf16.mxu0 0
      %517 = vmatpush1.bf16.msra.mxu0 0
      %518 = vmatprep.subr.bf16.mxu0 0
      %519 = vmatpush1.bf16.msra.mxu0 0
      %520 = vmatprep.subr.bf16.mxu0 0
      %521 = vmatpush1.bf16.msra.mxu0 0
      %522 = vmatprep.subr.bf16.mxu0 0
      %523 = vmatpush1.bf16.msra.mxu0 0
      %524 = vmatprep.subr.bf16.mxu0 0
      %525 = vmatpush1.bf16.msra.mxu0 0
      %526 = vmatprep.subr.bf16.mxu0 0
      %527 = vmatpush1.bf16.msra.mxu0 0
      %528 = vmatprep.subr.bf16.mxu0 0
      %529 = vmatpush1.bf16.msra.mxu0 0
      %530 = vmatprep.subr.bf16.mxu0 0
      %531 = vmatpush1.bf16.msra.mxu0 0
      %532 = vmatprep.subr.bf16.mxu0 0
      %533 = vmatpush1.bf16.msra.mxu0 0
      %534 = vmatprep.subr.bf16.mxu0 0
      %535 = vmatpush1.bf16.msra.mxu0 0
      %536 = vmatprep.mubr.bf16.mxu0 0
      %537 = vmatmul.mubr.bf16.gmra.mrb[0].mxu0 %v453
      %v538 = vpop.f32.mrb[0].mxu0
      %v539 = vadd.f32 0.0, %v538
      %v540 = vpop.f32.mrb[0].mxu0
      %v541 = vpop.f32.mrb[0].mxu0
      %v542 = vadd.f32 0.0, %v541
      %v543 = vpop.f32.mrb[0].mxu0
      %544 = vmatprep.mubr.bf16.mxu0 0
      %545 = vmatmul.mubr.bf16.gmra.mrb[0].mxu0 %v456
      %v546 = vpop.f32.mrb[0].mxu0
      %v547 = vadd.f32 0.0, %v546
      %v548 = vpop.f32.mrb[0].mxu0
      %v549 = vpop.f32.mrb[0].mxu0
      %v550 = vadd.f32 0.0, %v549
      %v551 = vpop.f32.mrb[0].mxu0
      %552 = vmatprep.mubr.bf16.mxu0 0
      %553 = vmatmul.mubr.bf16.gmra.mrb[0].mxu0 %v459
      %v554 = vpop.f32.mrb[0].mxu0
      %v555 = vadd.f32 0.0, %v554
      %v556 = vpop.f32.mrb[0].mxu0
      %v557 = vpop.f32.mrb[0].mxu0
      %v558 = vadd.f32 0.0, %v557
      %v559 = vpop.f32.mrb[0].mxu0
      %560 = vmatprep.mubr.bf16.mxu0 0
      %561 = vmatmul.mubr.bf16.gmra.mrb[0].mxu0 %v462
      %v562 = vpop.f32.mrb[0].mxu0
      %v563 = vadd.f32 0.0, %v562
      %v564 = vpop.f32.mrb[0].mxu0
      %v565 = vpop.f32.mrb[0].mxu0
      %v566 = vadd.f32 0.0, %v565
      %v567 = vpop.f32.mrb[0].mxu0
      %568 = vmatprep.mubr.bf16.mxu0 0
      %569 = vmatmul.mubr.bf16.gmra.mrb[0].mxu0 %v465
      %v570 = vpop.f32.mrb[0].mxu0
      %v571 = vadd.f32 0.0, %v570
      %v572 = vpop.f32.mrb[0].mxu0
      %v573 = vpop.f32.mrb[0].mxu0
      %v574 = vadd.f32 0.0, %v573
      %v575 = vpop.f32.mrb[0].mxu0
      %576 = vmatprep.mubr.bf16.mxu0 0
      %577 = vmatmul.mubr.bf16.gmra.mrb[0].mxu0 %v468
      %v578 = vpop.f32.mrb[0].mxu0
      %v579 = vadd.f32 0.0, %v578
      %v580 = vpop.f32.mrb[0].mxu0
      %v581 = vpop.f32.mrb[0].mxu0
      %v582 = vadd.f32 0.0, %v581
      %v583 = vpop.f32.mrb[0].mxu0
      %584 = vmatprep.mubr.bf16.mxu0 0
      %585 = vmatmul.mubr.bf16.gmra.mrb[0].mxu0 %v471
      %v586 = vpop.f32.mrb[0].mxu0
      %v587 = vadd.f32 0.0, %v586
      %v588 = vpop.f32.mrb[0].mxu0
      %v589 = vpop.f32.mrb[0].mxu0
      %v590 = vadd.f32 0.0, %v589
      %v591 = vpop.f32.mrb[0].mxu0
      %592 = vmatprep.mubr.bf16.mxu0 0
      %593 = vmatmul.mubr.bf16.gmra.mrb[0].mxu0 %v474
      %v594 = vpop.f32.mrb[0].mxu0
      %v595 = vadd.f32 0.0, %v594
      %v596 = vpop.f32.mrb[0].mxu0
      %v597 = vpop.f32.mrb[0].mxu0
      %v598 = vadd.f32 0.0, %v597
      %v599 = vpop.f32.mrb[0].mxu0
      %600 = vmatprep.mubr.bf16.mxu0 0
      %601 = vmatmul.mubr.bf16.gmra.mrb[0].mxu0 %v477
      %v602 = vpop.f32.mrb[0].mxu0
      %v603 = vadd.f32 0.0, %v602
      %v604 = vpop.f32.mrb[0].mxu0
      %v605 = vpop.f32.mrb[0].mxu0
      %v606 = vadd.f32 0.0, %v605
      %v607 = vpop.f32.mrb[0].mxu0
      %608 = vmatprep.mubr.bf16.mxu0 0
      %609 = vmatmul.mubr.bf16.gmra.mrb[0].mxu0 %v480
      %v610 = vpop.f32.mrb[0].mxu0
      %v611 = vadd.f32 0.0, %v610
      %v612 = vpop.f32.mrb[0].mxu0
      %v613 = vpop.f32.mrb[0].mxu0
      %v614 = vadd.f32 0.0, %v613
      %v615 = vpop.f32.mrb[0].mxu0
      %616 = vmatprep.mubr.bf16.mxu0 0
      %617 = vmatmul.mubr.bf16.gmra.mrb[0].mxu0 %v483
      %v618 = vpop.f32.mrb[0].mxu0
      %v619 = vadd.f32 0.0, %v618
      %v620 = vpop.f32.mrb[0].mxu0
      %v621 = vpop.f32.mrb[0].mxu0
      %v622 = vadd.f32 0.0, %v621
      %v623 = vpop.f32.mrb[0].mxu0
      %624 = vmatprep.mubr.bf16.mxu0 0
      %625 = vmatmul.mubr.bf16.gmra.mrb[0].mxu0 %v486
      %v626 = vpop.f32.mrb[0].mxu0
      %v627 = vadd.f32 0.0, %v626
      %v628 = vpop.f32.mrb[0].mxu0
      %v629 = vpop.f32.mrb[0].mxu0
      %v630 = vadd.f32 0.0, %v629
      %v631 = vpop.f32.mrb[0].mxu0
      %632 = vmatprep.mubr.bf16.mxu0 0
      %633 = vmatmul.mubr.bf16.gmra.mrb[0].mxu0 %v489
      %v634 = vpop.f32.mrb[0].mxu0
      %v635 = vadd.f32 0.0, %v634
      %v636 = vpop.f32.mrb[0].mxu0
      %v637 = vpop.f32.mrb[0].mxu0
      %v638 = vadd.f32 0.0, %v637
      %v639 = vpop.f32.mrb[0].mxu0
      %640 = vmatprep.mubr.bf16.mxu0 0
      %641 = vmatmul.mubr.bf16.gmra.mrb[0].mxu0 %v492
      %v642 = vpop.f32.mrb[0].mxu0
      %v643 = vadd.f32 0.0, %v642
      %v644 = vpop.f32.mrb[0].mxu0
      %v645 = vpop.f32.mrb[0].mxu0
      %v646 = vadd.f32 0.0, %v645
      %v647 = vpop.f32.mrb[0].mxu0
      %648 = vmatprep.mubr.bf16.mxu0 0
      %649 = vmatmul.mubr.bf16.gmra.mrb[0].mxu0 %v495
      %v650 = vpop.f32.mrb[0].mxu0
      %v651 = vadd.f32 0.0, %v650
      %v652 = vpop.f32.mrb[0].mxu0
      %v653 = vpop.f32.mrb[0].mxu0
      %v654 = vadd.f32 0.0, %v653
      %v655 = vpop.f32.mrb[0].mxu0
      %656 = vmatprep.mubr.bf16.mxu0 0
      %657 = vmatmul.mubr.bf16.gmra.mrb[0].mxu0 %v498
      %v658 = vpop.f32.mrb[0].mxu0
      %v659 = vadd.f32 0.0, %v658
      %v660 = vpop.f32.mrb[0].mxu0
      %v661 = vpop.f32.mrb[0].mxu0
      %v662 = vadd.f32 0.0, %v661
      %v663 = vpop.f32.mrb[0].mxu0
      %664 = vdwg.mxu0
      %v667 = vunpack.c.l.b16 %v314
      %v668 = vunpack.c.l.b16 %v315
      %v669 = vpack.c.b16 %v668, %v667
      %v671 = vsel %vm451, %v669, 0
      %v674 = vsel %vm500, %v368, 0
      %676 = vmatprep.subr.bf16.mxu0 0
      %677 = vmatpush1.bf16.msra.mxu0 %v674
      %678 = vmatprep.subr.bf16.mxu0 0
      %679 = vmatpush1.bf16.msra.mxu0 0
      %680 = vmatprep.subr.bf16.mxu0 0
      %681 = vmatpush1.bf16.msra.mxu0 0
      %682 = vmatprep.subr.bf16.mxu0 0
      %683 = vmatpush1.bf16.msra.mxu0 0
      %684 = vmatprep.subr.bf16.mxu0 0
      %685 = vmatpush1.bf16.msra.mxu0 0
      %686 = vmatprep.subr.bf16.mxu0 0
      %687 = vmatpush1.bf16.msra.mxu0 0
      %688 = vmatprep.subr.bf16.mxu0 0
      %689 = vmatpush1.bf16.msra.mxu0 0
      %690 = vmatprep.subr.bf16.mxu0 0
      %691 = vmatpush1.bf16.msra.mxu0 0
      %692 = vmatprep.subr.bf16.mxu0 0
      %693 = vmatpush1.bf16.msra.mxu0 0
      %694 = vmatprep.subr.bf16.mxu0 0
      %695 = vmatpush1.bf16.msra.mxu0 0
      %696 = vmatprep.subr.bf16.mxu0 0
      %697 = vmatpush1.bf16.msra.mxu0 0
      %698 = vmatprep.subr.bf16.mxu0 0
      %699 = vmatpush1.bf16.msra.mxu0 0
      %700 = vmatprep.subr.bf16.mxu0 0
      %701 = vmatpush1.bf16.msra.mxu0 0
      %702 = vmatprep.subr.bf16.mxu0 0
      %703 = vmatpush1.bf16.msra.mxu0 0
      %704 = vmatprep.subr.bf16.mxu0 0
      %705 = vmatpush1.bf16.msra.mxu0 0
      %706 = vmatprep.subr.bf16.mxu0 0
      %707 = vmatpush1.bf16.msra.mxu0 0
      %708 = vmatprep.mubr.bf16.mxu0 0
      %709 = vmatmul.mubr.bf16.gmra.mrb[0].mxu0 %v671
      %v710 = vpop.f32.mrb[0].mxu0
      %v711 = vadd.f32 %v539, %v710
      %v712 = vpop.f32.mrb[0].mxu0
      %v713 = vpop.f32.mrb[0].mxu0
      %v714 = vadd.f32 %v542, %v713
      %v715 = vpop.f32.mrb[0].mxu0
      %716 = vmatprep.mubr.bf16.mxu0 0
      %717 = vmatmul.mubr.bf16.gmra.mrb[0].mxu0 %v453
      %v718 = vpop.f32.mrb[0].mxu0
      %v719 = vadd.f32 %v547, %v718
      %v720 = vpop.f32.mrb[0].mxu0
      %v721 = vpop.f32.mrb[0].mxu0
      %v722 = vadd.f32 %v550, %v721
      %v723 = vpop.f32.mrb[0].mxu0
      %724 = vmatprep.mubr.bf16.mxu0 0
      %725 = vmatmul.mubr.bf16.gmra.mrb[0].mxu0 %v456
      %v726 = vpop.f32.mrb[0].mxu0
      %v727 = vadd.f32 %v555, %v726
      %v728 = vpop.f32.mrb[0].mxu0
      %v729 = vpop.f32.mrb[0].mxu0
      %v730 = vadd.f32 %v558, %v729
      %v731 = vpop.f32.mrb[0].mxu0
      %732 = vmatprep.mubr.bf16.mxu0 0
      %733 = vmatmul.mubr.bf16.gmra.mrb[0].mxu0 %v459
      %v734 = vpop.f32.mrb[0].mxu0
      %v735 = vadd.f32 %v563, %v734
      %v736 = vpop.f32.mrb[0].mxu0
      %v737 = vpop.f32.mrb[0].mxu0
      %v738 = vadd.f32 %v566, %v737
      %v739 = vpop.f32.mrb[0].mxu0
      %740 = vmatprep.mubr.bf16.mxu0 0
      %741 = vmatmul.mubr.bf16.gmra.mrb[0].mxu0 %v462
      %v742 = vpop.f32.mrb[0].mxu0
      %v743 = vadd.f32 %v571, %v742
      %v744 = vpop.f32.mrb[0].mxu0
      %v745 = vpop.f32.mrb[0].mxu0
      %v746 = vadd.f32 %v574, %v745
      %v747 = vpop.f32.mrb[0].mxu0
      %748 = vmatprep.mubr.bf16.mxu0 0
      %749 = vmatmul.mubr.bf16.gmra.mrb[0].mxu0 %v465
      %v750 = vpop.f32.mrb[0].mxu0
      %v751 = vadd.f32 %v579, %v750
      %v752 = vpop.f32.mrb[0].mxu0
      %v753 = vpop.f32.mrb[0].mxu0
      %v754 = vadd.f32 %v582, %v753
      %v755 = vpop.f32.mrb[0].mxu0
      %756 = vmatprep.mubr.bf16.mxu0 0
      %757 = vmatmul.mubr.bf16.gmra.mrb[0].mxu0 %v468
      %v758 = vpop.f32.mrb[0].mxu0
      %v759 = vadd.f32 %v587, %v758
      %v760 = vpop.f32.mrb[0].mxu0
      %v761 = vpop.f32.mrb[0].mxu0
      %v762 = vadd.f32 %v590, %v761
      %v763 = vpop.f32.mrb[0].mxu0
      %764 = vmatprep.mubr.bf16.mxu0 0
      %765 = vmatmul.mubr.bf16.gmra.mrb[0].mxu0 %v471
      %v766 = vpop.f32.mrb[0].mxu0
      %v767 = vadd.f32 %v595, %v766
      %v768 = vpop.f32.mrb[0].mxu0
      %v769 = vpop.f32.mrb[0].mxu0
      %v770 = vadd.f32 %v598, %v769
      %v771 = vpop.f32.mrb[0].mxu0
      %772 = vmatprep.mubr.bf16.mxu0 0
      %773 = vmatmul.mubr.bf16.gmra.mrb[0].mxu0 %v474
      %v774 = vpop.f32.mrb[0].mxu0
      %v775 = vadd.f32 %v603, %v774
      %v776 = vpop.f32.mrb[0].mxu0
      %v777 = vpop.f32.mrb[0].mxu0
      %v778 = vadd.f32 %v606, %v777
      %v779 = vpop.f32.mrb[0].mxu0
      %780 = vmatprep.mubr.bf16.mxu0 0
      %781 = vmatmul.mubr.bf16.gmra.mrb[0].mxu0 %v477
      %v782 = vpop.f32.mrb[0].mxu0
      %v783 = vadd.f32 %v611, %v782
      %v784 = vpop.f32.mrb[0].mxu0
      %v785 = vpop.f32.mrb[0].mxu0
      %v786 = vadd.f32 %v614, %v785
      %v787 = vpop.f32.mrb[0].mxu0
      %788 = vmatprep.mubr.bf16.mxu0 0
      %789 = vmatmul.mubr.bf16.gmra.mrb[0].mxu0 %v480
      %v790 = vpop.f32.mrb[0].mxu0
      %v791 = vadd.f32 %v619, %v790
      %v792 = vpop.f32.mrb[0].mxu0
      %v793 = vpop.f32.mrb[0].mxu0
      %v794 = vadd.f32 %v622, %v793
      %v795 = vpop.f32.mrb[0].mxu0
      %796 = vmatprep.mubr.bf16.mxu0 0
      %797 = vmatmul.mubr.bf16.gmra.mrb[0].mxu0 %v483
      %v798 = vpop.f32.mrb[0].mxu0
      %v799 = vadd.f32 %v627, %v798
      %v800 = vpop.f32.mrb[0].mxu0
      %v801 = vpop.f32.mrb[0].mxu0
      %v802 = vadd.f32 %v630, %v801
      %v803 = vpop.f32.mrb[0].mxu0
      %804 = vmatprep.mubr.bf16.mxu0 0
      %805 = vmatmul.mubr.bf16.gmra.mrb[0].mxu0 %v486
      %v806 = vpop.f32.mrb[0].mxu0
      %v807 = vadd.f32 %v635, %v806
      %v808 = vpop.f32.mrb[0].mxu0
      %v809 = vpop.f32.mrb[0].mxu0
      %v810 = vadd.f32 %v638, %v809
      %v811 = vpop.f32.mrb[0].mxu0
      %812 = vmatprep.mubr.bf16.mxu0 0
      %813 = vmatmul.mubr.bf16.gmra.mrb[0].mxu0 %v489
      %v814 = vpop.f32.mrb[0].mxu0
      %v815 = vadd.f32 %v643, %v814
      %v816 = vpop.f32.mrb[0].mxu0
      %v817 = vpop.f32.mrb[0].mxu0
      %v818 = vadd.f32 %v646, %v817
      %v819 = vpop.f32.mrb[0].mxu0
      %820 = vmatprep.mubr.bf16.mxu0 0
      %821 = vmatmul.mubr.bf16.gmra.mrb[0].mxu0 %v492
      %v822 = vpop.f32.mrb[0].mxu0
      %v823 = vadd.f32 %v651, %v822
      %v824 = vpop.f32.mrb[0].mxu0
      %v825 = vpop.f32.mrb[0].mxu0
      %v826 = vadd.f32 %v654, %v825
      %v827 = vpop.f32.mrb[0].mxu0
      %828 = vmatprep.mubr.bf16.mxu0 0
      %829 = vmatmul.mubr.bf16.gmra.mrb[0].mxu0 %v495
      %v830 = vpop.f32.mrb[0].mxu0
      %v831 = vadd.f32 %v659, %v830
      %v832 = vpop.f32.mrb[0].mxu0
      %v833 = vpop.f32.mrb[0].mxu0
      %v834 = vadd.f32 %v662, %v833
      %v835 = vpop.f32.mrb[0].mxu0
      %836 = vdwg.mxu0
      %s837 = scalar_lea.vmem [#allocation2], 12
      %v838 = vld [vmem:[%s837] sm:$0x3]
      %v841 = vunpack.c.l.b16 %v365
      %v842 = vunpack.c.l.b16 %v366
      %v843 = vpack.c.b16 %v842, %v841
      %v845 = vsel %vm451, %v843, 0
      %v848 = vsel %vm500, %v838, 0
      %850 = vmatprep.subr.bf16.mxu0 0
      %851 = vmatpush1.bf16.msra.mxu0 %v848
      %852 = vmatprep.subr.bf16.mxu0 0
      %853 = vmatpush1.bf16.msra.mxu0 0
      %854 = vmatprep.subr.bf16.mxu0 0
      %855 = vmatpush1.bf16.msra.mxu0 0
      %856 = vmatprep.subr.bf16.mxu0 0
      %857 = vmatpush1.bf16.msra.mxu0 0
      %858 = vmatprep.subr.bf16.mxu0 0
      %859 = vmatpush1.bf16.msra.mxu0 0
      %860 = vmatprep.subr.bf16.mxu0 0
      %861 = vmatpush1.bf16.msra.mxu0 0
      %862 = vmatprep.subr.bf16.mxu0 0
      %863 = vmatpush1.bf16.msra.mxu0 0
      %864 = vmatprep.subr.bf16.mxu0 0
      %865 = vmatpush1.bf16.msra.mxu0 0
      %866 = vmatprep.subr.bf16.mxu0 0
      %867 = vmatpush1.bf16.msra.mxu0 0
      %868 = vmatprep.subr.bf16.mxu0 0
      %869 = vmatpush1.bf16.msra.mxu0 0
      %870 = vmatprep.subr.bf16.mxu0 0
      %871 = vmatpush1.bf16.msra.mxu0 0
      %872 = vmatprep.subr.bf16.mxu0 0
      %873 = vmatpush1.bf16.msra.mxu0 0
      %874 = vmatprep.subr.bf16.mxu0 0
      %875 = vmatpush1.bf16.msra.mxu0 0
      %876 = vmatprep.subr.bf16.mxu0 0
      %877 = vmatpush1.bf16.msra.mxu0 0
      %878 = vmatprep.subr.bf16.mxu0 0
      %879 = vmatpush1.bf16.msra.mxu0 0
      %880 = vmatprep.subr.bf16.mxu0 0
      %881 = vmatpush1.bf16.msra.mxu0 0
      %882 = vmatprep.mubr.bf16.mxu0 0
      %883 = vmatmul.mubr.bf16.gmra.mrb[0].mxu0 %v456
      %v884 = vpop.f32.mrb[0].mxu0
      %v885 = vadd.f32 0.0, %v884
      %v886 = vpop.f32.mrb[0].mxu0
      %v887 = vpop.f32.mrb[0].mxu0
      %v888 = vadd.f32 0.0, %v887
      %v889 = vpop.f32.mrb[0].mxu0
      %890 = vmatprep.mubr.bf16.mxu0 0
      %891 = vmatmul.mubr.bf16.gmra.mrb[0].mxu0 %v459
      %v892 = vpop.f32.mrb[0].mxu0
      %v893 = vadd.f32 0.0, %v892
      %v894 = vpop.f32.mrb[0].mxu0
      %v895 = vpop.f32.mrb[0].mxu0
      %v896 = vadd.f32 0.0, %v895
      %v897 = vpop.f32.mrb[0].mxu0
      %898 = vmatprep.mubr.bf16.mxu0 0
      %899 = vmatmul.mubr.bf16.gmra.mrb[0].mxu0 %v462
      %v900 = vpop.f32.mrb[0].mxu0
      %v901 = vadd.f32 0.0, %v900
      %v902 = vpop.f32.mrb[0].mxu0
      %v903 = vpop.f32.mrb[0].mxu0
      %v904 = vadd.f32 0.0, %v903
      %v905 = vpop.f32.mrb[0].mxu0
      %906 = vmatprep.mubr.bf16.mxu0 0
      %907 = vmatmul.mubr.bf16.gmra.mrb[0].mxu0 %v465
      %v908 = vpop.f32.mrb[0].mxu0
      %v909 = vadd.f32 0.0, %v908
      %v910 = vpop.f32.mrb[0].mxu0
      %v911 = vpop.f32.mrb[0].mxu0
      %v912 = vadd.f32 0.0, %v911
      %v913 = vpop.f32.mrb[0].mxu0
      %914 = vmatprep.mubr.bf16.mxu0 0
      %915 = vmatmul.mubr.bf16.gmra.mrb[0].mxu0 %v468
      %v916 = vpop.f32.mrb[0].mxu0
      %v917 = vadd.f32 0.0, %v916
      %v918 = vpop.f32.mrb[0].mxu0
      %v919 = vpop.f32.mrb[0].mxu0
      %v920 = vadd.f32 0.0, %v919
      %v921 = vpop.f32.mrb[0].mxu0
      %922 = vmatprep.mubr.bf16.mxu0 0
      %923 = vmatmul.mubr.bf16.gmra.mrb[0].mxu0 %v471
      %v924 = vpop.f32.mrb[0].mxu0
      %v925 = vadd.f32 0.0, %v924
      %v926 = vpop.f32.mrb[0].mxu0
      %v927 = vpop.f32.mrb[0].mxu0
      %v928 = vadd.f32 0.0, %v927
      %v929 = vpop.f32.mrb[0].mxu0
      %930 = vmatprep.mubr.bf16.mxu0 0
      %931 = vmatmul.mubr.bf16.gmra.mrb[0].mxu0 %v474
      %v932 = vpop.f32.mrb[0].mxu0
      %v933 = vadd.f32 0.0, %v932
      %v934 = vpop.f32.mrb[0].mxu0
      %v935 = vpop.f32.mrb[0].mxu0
      %v936 = vadd.f32 0.0, %v935
      %v937 = vpop.f32.mrb[0].mxu0
      %938 = vmatprep.mubr.bf16.mxu0 0
      %939 = vmatmul.mubr.bf16.gmra.mrb[0].mxu0 %v477
      %v940 = vpop.f32.mrb[0].mxu0
      %v941 = vadd.f32 0.0, %v940
      %v942 = vpop.f32.mrb[0].mxu0
      %v943 = vpop.f32.mrb[0].mxu0
      %v944 = vadd.f32 0.0, %v943
      %v945 = vpop.f32.mrb[0].mxu0
      %946 = vmatprep.mubr.bf16.mxu0 0
      %947 = vmatmul.mubr.bf16.gmra.mrb[0].mxu0 %v480
      %v948 = vpop.f32.mrb[0].mxu0
      %v949 = vadd.f32 0.0, %v948
      %v950 = vpop.f32.mrb[0].mxu0
      %v951 = vpop.f32.mrb[0].mxu0
      %v952 = vadd.f32 0.0, %v951
      %v953 = vpop.f32.mrb[0].mxu0
      %954 = vmatprep.mubr.bf16.mxu0 0
      %955 = vmatmul.mubr.bf16.gmra.mrb[0].mxu0 %v483
      %v956 = vpop.f32.mrb[0].mxu0
      %v957 = vadd.f32 0.0, %v956
      %v958 = vpop.f32.mrb[0].mxu0
      %v959 = vpop.f32.mrb[0].mxu0
      %v960 = vadd.f32 0.0, %v959
      %v961 = vpop.f32.mrb[0].mxu0
      %962 = vmatprep.mubr.bf16.mxu0 0
      %963 = vmatmul.mubr.bf16.gmra.mrb[0].mxu0 %v486
      %v964 = vpop.f32.mrb[0].mxu0
      %v965 = vadd.f32 0.0, %v964
      %v966 = vpop.f32.mrb[0].mxu0
      %v967 = vpop.f32.mrb[0].mxu0
      %v968 = vadd.f32 0.0, %v967
      %v969 = vpop.f32.mrb[0].mxu0
      %970 = vmatprep.mubr.bf16.mxu0 0
      %971 = vmatmul.mubr.bf16.gmra.mrb[0].mxu0 %v489
      %v972 = vpop.f32.mrb[0].mxu0
      %v973 = vadd.f32 0.0, %v972
      %v974 = vpop.f32.mrb[0].mxu0
      %v975 = vpop.f32.mrb[0].mxu0
      %v976 = vadd.f32 0.0, %v975
      %v977 = vpop.f32.mrb[0].mxu0
      %978 = vmatprep.mubr.bf16.mxu0 0
      %979 = vmatmul.mubr.bf16.gmra.mrb[0].mxu0 %v492
      %v980 = vpop.f32.mrb[0].mxu0
      %v981 = vadd.f32 0.0, %v980
      %v982 = vpop.f32.mrb[0].mxu0
      %v983 = vpop.f32.mrb[0].mxu0
      %v984 = vadd.f32 0.0, %v983
      %v985 = vpop.f32.mrb[0].mxu0
      %986 = vmatprep.mubr.bf16.mxu0 0
      %987 = vmatmul.mubr.bf16.gmra.mrb[0].mxu0 %v495
      %v988 = vpop.f32.mrb[0].mxu0
      %v989 = vadd.f32 0.0, %v988
      %v990 = vpop.f32.mrb[0].mxu0
      %v991 = vpop.f32.mrb[0].mxu0
      %v992 = vadd.f32 0.0, %v991
      %v993 = vpop.f32.mrb[0].mxu0
      %994 = vmatprep.mubr.bf16.mxu0 0
      %995 = vmatmul.mubr.bf16.gmra.mrb[0].mxu0 %v498
      %v996 = vpop.f32.mrb[0].mxu0
      %v997 = vadd.f32 0.0, %v996
      %v998 = vpop.f32.mrb[0].mxu0
      %v999 = vpop.f32.mrb[0].mxu0
      %v1000 = vadd.f32 0.0, %v999
      %v1001 = vpop.f32.mrb[0].mxu0
      %1002 = vmatprep.mubr.bf16.mxu0 0
      %1003 = vmatmul.mubr.bf16.gmra.mrb[0].mxu0 %v845
      %v1004 = vpop.f32.mrb[0].mxu0
      %v1005 = vadd.f32 0.0, %v1004
      %v1006 = vpop.f32.mrb[0].mxu0
      %v1007 = vpop.f32.mrb[0].mxu0
      %v1008 = vadd.f32 0.0, %v1007
      %v1009 = vpop.f32.mrb[0].mxu0
      %1010 = vdwg.mxu0
      %v1011 = vadd.f32 %v711, %v885
      %v1012 = vadd.f32 %v714, %v888
      %v1013 = vadd.f32 %v719, %v893
      %v1014 = vadd.f32 %v722, %v896
      %v1015 = vadd.f32 %v727, %v901
      %v1016 = vadd.f32 %v730, %v904
      %v1017 = vadd.f32 %v735, %v909
      %v1018 = vadd.f32 %v738, %v912
      %v1019 = vadd.f32 %v743, %v917
      %v1020 = vadd.f32 %v746, %v920
      %v1021 = vadd.f32 %v751, %v925
      %v1022 = vadd.f32 %v754, %v928
      %v1023 = vadd.f32 %v759, %v933
      %v1024 = vadd.f32 %v762, %v936
      %v1025 = vadd.f32 %v767, %v941
      %v1026 = vadd.f32 %v770, %v944
      %v1027 = vadd.f32 %v775, %v949
      %v1028 = vadd.f32 %v778, %v952
      %v1029 = vadd.f32 %v783, %v957
      %v1030 = vadd.f32 %v786, %v960
      %v1031 = vadd.f32 %v791, %v965
      %v1032 = vadd.f32 %v794, %v968
      %v1033 = vadd.f32 %v799, %v973
      %v1034 = vadd.f32 %v802, %v976
      %v1035 = vadd.f32 %v807, %v981
      %v1036 = vadd.f32 %v810, %v984
      %v1037 = vadd.f32 %v815, %v989
      %v1038 = vadd.f32 %v818, %v992
      %v1039 = vadd.f32 %v823, %v997
      %v1040 = vadd.f32 %v826, %v1000
      %v1041 = vadd.f32 %v831, %v1005
      %v1042 = vadd.f32 %v834, %v1008
      %vm1043 = vsmask.f32 3328
      %vm1044 = vsmask.f32 7440
      %vm1045 = vmor %vm1043, %vm1044
      %v1047 = vshrl.u32 %v314, 16
      %v1049 = vrot.slane %v1047, 4
      %v1050 = vshll.u32 %v314, 16
      %v1052 = vrot.slane %v1050, 5
      %v1053 = vor.u32 %v1049, %v1052
      %v1054 = vrot.slane %v1053, 4
      %v1056 = vshll.u32 %v315, 16
      %v1058 = vrot.slane %v1056, 5
      %v1059 = vsel %vm1045, %v1054, %v1058
      %v1060 = vshrl.u32 %v315, 16
      %v1062 = vrot.slane %v1060, 4
      %v1063 = vor.u32 %v1062, %v1058
      %v1064 = vrot.slane %v1063, 4
      %v1066 = vshll.u32 %v316, 16
      %v1068 = vrot.slane %v1066, 5
      %v1069 = vsel %vm1045, %v1064, %v1068
      %v1071 = vshrl.u32 %v317, 16
      %v1073 = vrot.slane %v1071, 4
      %v1074 = vshll.u32 %v317, 16
      %v1076 = vrot.slane %v1074, 5
      %v1077 = vor.u32 %v1073, %v1076
      %v1078 = vrot.slane %v1077, 4
      %v1080 = vshll.u32 %v318, 16
      %v1082 = vrot.slane %v1080, 5
      %v1083 = vsel %vm1045, %v1078, %v1082
      %v1084 = vshrl.u32 %v318, 16
      %v1086 = vrot.slane %v1084, 4
      %v1087 = vor.u32 %v1086, %v1082
      %v1088 = vrot.slane %v1087, 4
      %v1090 = vshll.u32 %v319, 16
      %v1092 = vrot.slane %v1090, 5
      %v1093 = vsel %vm1045, %v1088, %v1092
      %v1095 = vshrl.u32 %v320, 16
      %v1097 = vrot.slane %v1095, 4
      %v1098 = vshll.u32 %v320, 16
      %v1100 = vrot.slane %v1098, 5
      %v1101 = vor.u32 %v1097, %v1100
      %v1102 = vrot.slane %v1101, 4
      %v1104 = vshll.u32 %v321, 16
      %v1106 = vrot.slane %v1104, 5
      %v1107 = vsel %vm1045, %v1102, %v1106
      %v1108 = vshrl.u32 %v321, 16
      %v1110 = vrot.slane %v1108, 4
      %v1111 = vor.u32 %v1110, %v1106
      %v1112 = vrot.slane %v1111, 4
      %v1114 = vshll.u32 %v322, 16
      %v1116 = vrot.slane %v1114, 5
      %v1117 = vsel %vm1045, %v1112, %v1116
      %v1119 = vshrl.u32 %v323, 16
      %v1121 = vrot.slane %v1119, 4
      %v1122 = vshll.u32 %v323, 16
      %v1124 = vrot.slane %v1122, 5
      %v1125 = vor.u32 %v1121, %v1124
      %v1126 = vrot.slane %v1125, 4
      %v1128 = vshll.u32 %v324, 16
      %v1130 = vrot.slane %v1128, 5
      %v1131 = vsel %vm1045, %v1126, %v1130
      %v1132 = vshrl.u32 %v324, 16
      %v1134 = vrot.slane %v1132, 4
      %v1135 = vor.u32 %v1134, %v1130
      %v1136 = vrot.slane %v1135, 4
      %v1138 = vshll.u32 %v325, 16
      %v1140 = vrot.slane %v1138, 5
      %v1141 = vsel %vm1045, %v1136, %v1140
      %v1143 = vshrl.u32 %v326, 16
      %v1145 = vrot.slane %v1143, 4
      %v1146 = vshll.u32 %v326, 16
      %v1148 = vrot.slane %v1146, 5
      %v1149 = vor.u32 %v1145, %v1148
      %v1150 = vrot.slane %v1149, 4
      %v1152 = vshll.u32 %v327, 16
      %v1154 = vrot.slane %v1152, 5
      %v1155 = vsel %vm1045, %v1150, %v1154
      %v1156 = vshrl.u32 %v327, 16
      %v1158 = vrot.slane %v1156, 4
      %v1159 = vor.u32 %v1158, %v1154
      %v1160 = vrot.slane %v1159, 4
      %v1162 = vshll.u32 %v328, 16
      %v1164 = vrot.slane %v1162, 5
      %v1165 = vsel %vm1045, %v1160, %v1164
      %v1167 = vshrl.u32 %v329, 16
      %v1169 = vrot.slane %v1167, 4
      %v1170 = vshll.u32 %v329, 16
      %v1172 = vrot.slane %v1170, 5
      %v1173 = vor.u32 %v1169, %v1172
      %v1174 = vrot.slane %v1173, 4
      %v1176 = vshll.u32 %v330, 16
      %v1178 = vrot.slane %v1176, 5
      %v1179 = vsel %vm1045, %v1174, %v1178
      %v1180 = vshrl.u32 %v330, 16
      %v1182 = vrot.slane %v1180, 4
      %v1183 = vor.u32 %v1182, %v1178
      %v1184 = vrot.slane %v1183, 4
      %v1186 = vshll.u32 %v331, 16
      %v1188 = vrot.slane %v1186, 5
      %v1189 = vsel %vm1045, %v1184, %v1188
      %v1191 = vshrl.u32 %v332, 16
      %v1193 = vrot.slane %v1191, 4
      %v1194 = vshll.u32 %v332, 16
      %v1196 = vrot.slane %v1194, 5
      %v1197 = vor.u32 %v1193, %v1196
      %v1198 = vrot.slane %v1197, 4
      %v1200 = vshll.u32 %v333, 16
      %v1202 = vrot.slane %v1200, 5
      %v1203 = vsel %vm1045, %v1198, %v1202
      %v1204 = vshrl.u32 %v333, 16
      %v1206 = vrot.slane %v1204, 4
      %v1207 = vor.u32 %v1206, %v1202
      %v1208 = vrot.slane %v1207, 4
      %v1210 = vshll.u32 %v334, 16
      %v1212 = vrot.slane %v1210, 5
      %v1213 = vsel %vm1045, %v1208, %v1212
      %v1215 = vshrl.u32 %v335, 16
      %v1217 = vrot.slane %v1215, 4
      %v1218 = vshll.u32 %v335, 16
      %v1220 = vrot.slane %v1218, 5
      %v1221 = vor.u32 %v1217, %v1220
      %v1222 = vrot.slane %v1221, 4
      %v1224 = vshll.u32 %v336, 16
      %v1226 = vrot.slane %v1224, 5
      %v1227 = vsel %vm1045, %v1222, %v1226
      %v1228 = vshrl.u32 %v336, 16
      %v1230 = vrot.slane %v1228, 4
      %v1231 = vor.u32 %v1230, %v1226
      %v1232 = vrot.slane %v1231, 4
      %v1234 = vshll.u32 %v337, 16
      %v1236 = vrot.slane %v1234, 5
      %v1237 = vsel %vm1045, %v1232, %v1236
      %v1239 = vshrl.u32 %v338, 16
      %v1241 = vrot.slane %v1239, 4
      %v1242 = vshll.u32 %v338, 16
      %v1244 = vrot.slane %v1242, 5
      %v1245 = vor.u32 %v1241, %v1244
      %v1246 = vrot.slane %v1245, 4
      %v1248 = vshll.u32 %v339, 16
      %v1250 = vrot.slane %v1248, 5
      %v1251 = vsel %vm1045, %v1246, %v1250
      %v1252 = vshrl.u32 %v339, 16
      %v1254 = vrot.slane %v1252, 4
      %v1255 = vor.u32 %v1254, %v1250
      %v1256 = vrot.slane %v1255, 4
      %v1258 = vshll.u32 %v340, 16
      %v1260 = vrot.slane %v1258, 5
      %v1261 = vsel %vm1045, %v1256, %v1260
      %v1263 = vshrl.u32 %v341, 16
      %v1265 = vrot.slane %v1263, 4
      %v1266 = vshll.u32 %v341, 16
      %v1268 = vrot.slane %v1266, 5
      %v1269 = vor.u32 %v1265, %v1268
      %v1270 = vrot.slane %v1269, 4
      %v1272 = vshll.u32 %v342, 16
      %v1274 = vrot.slane %v1272, 5
      %v1275 = vsel %vm1045, %v1270, %v1274
      %v1276 = vshrl.u32 %v342, 16
      %v1278 = vrot.slane %v1276, 4
      %v1279 = vor.u32 %v1278, %v1274
      %v1280 = vrot.slane %v1279, 4
      %v1282 = vshll.u32 %v343, 16
      %v1284 = vrot.slane %v1282, 5
      %v1285 = vsel %vm1045, %v1280, %v1284
      %v1287 = vshrl.u32 %v344, 16
      %v1289 = vrot.slane %v1287, 4
      %v1290 = vshll.u32 %v344, 16
      %v1292 = vrot.slane %v1290, 5
      %v1293 = vor.u32 %v1289, %v1292
      %v1294 = vrot.slane %v1293, 4
      %v1296 = vshll.u32 %v345, 16
      %v1298 = vrot.slane %v1296, 5
      %v1299 = vsel %vm1045, %v1294, %v1298
      %v1300 = vshrl.u32 %v345, 16
      %v1302 = vrot.slane %v1300, 4
      %v1303 = vor.u32 %v1302, %v1298
      %v1304 = vrot.slane %v1303, 4
      %v1306 = vshll.u32 %v346, 16
      %v1308 = vrot.slane %v1306, 5
      %v1309 = vsel %vm1045, %v1304, %v1308
      %v1311 = vshrl.u32 %v347, 16
      %v1313 = vrot.slane %v1311, 4
      %v1314 = vshll.u32 %v347, 16
      %v1316 = vrot.slane %v1314, 5
      %v1317 = vor.u32 %v1313, %v1316
      %v1318 = vrot.slane %v1317, 4
      %v1320 = vshll.u32 %v348, 16
      %v1322 = vrot.slane %v1320, 5
      %v1323 = vsel %vm1045, %v1318, %v1322
      %v1324 = vshrl.u32 %v348, 16
      %v1326 = vrot.slane %v1324, 4
      %v1327 = vor.u32 %v1326, %v1322
      %v1328 = vrot.slane %v1327, 4
      %v1330 = vshll.u32 %v349, 16
      %v1332 = vrot.slane %v1330, 5
      %v1333 = vsel %vm1045, %v1328, %v1332
      %v1335 = vshrl.u32 %v350, 16
      %v1337 = vrot.slane %v1335, 4
      %v1338 = vshll.u32 %v350, 16
      %v1340 = vrot.slane %v1338, 5
      %v1341 = vor.u32 %v1337, %v1340
      %v1342 = vrot.slane %v1341, 4
      %v1344 = vshll.u32 %v351, 16
      %v1346 = vrot.slane %v1344, 5
      %v1347 = vsel %vm1045, %v1342, %v1346
      %v1348 = vshrl.u32 %v351, 16
      %v1350 = vrot.slane %v1348, 4
      %v1351 = vor.u32 %v1350, %v1346
      %v1352 = vrot.slane %v1351, 4
      %v1354 = vshll.u32 %v352, 16
      %v1356 = vrot.slane %v1354, 5
      %v1357 = vsel %vm1045, %v1352, %v1356
      %v1359 = vshrl.u32 %v353, 16
      %v1361 = vrot.slane %v1359, 4
      %v1362 = vshll.u32 %v353, 16
      %v1364 = vrot.slane %v1362, 5
      %v1365 = vor.u32 %v1361, %v1364
      %v1366 = vrot.slane %v1365, 4
      %v1368 = vshll.u32 %v354, 16
      %v1370 = vrot.slane %v1368, 5
      %v1371 = vsel %vm1045, %v1366, %v1370
      %v1372 = vshrl.u32 %v354, 16
      %v1374 = vrot.slane %v1372, 4
      %v1375 = vor.u32 %v1374, %v1370
      %v1376 = vrot.slane %v1375, 4
      %v1378 = vshll.u32 %v355, 16
      %v1380 = vrot.slane %v1378, 5
      %v1381 = vsel %vm1045, %v1376, %v1380
      %v1383 = vshrl.u32 %v356, 16
      %v1385 = vrot.slane %v1383, 4
      %v1386 = vshll.u32 %v356, 16
      %v1388 = vrot.slane %v1386, 5
      %v1389 = vor.u32 %v1385, %v1388
      %v1390 = vrot.slane %v1389, 4
      %v1392 = vshll.u32 %v357, 16
      %v1394 = vrot.slane %v1392, 5
      %v1395 = vsel %vm1045, %v1390, %v1394
      %v1396 = vshrl.u32 %v357, 16
      %v1398 = vrot.slane %v1396, 4
      %v1399 = vor.u32 %v1398, %v1394
      %v1400 = vrot.slane %v1399, 4
      %v1402 = vshll.u32 %v358, 16
      %v1404 = vrot.slane %v1402, 5
      %v1405 = vsel %vm1045, %v1400, %v1404
      %v1407 = vshrl.u32 %v359, 16
      %v1409 = vrot.slane %v1407, 4
      %v1410 = vshll.u32 %v359, 16
      %v1412 = vrot.slane %v1410, 5
      %v1413 = vor.u32 %v1409, %v1412
      %v1414 = vrot.slane %v1413, 4
      %v1416 = vshll.u32 %v360, 16
      %v1418 = vrot.slane %v1416, 5
      %v1419 = vsel %vm1045, %v1414, %v1418
      %v1420 = vshrl.u32 %v360, 16
      %v1422 = vrot.slane %v1420, 4
      %v1423 = vor.u32 %v1422, %v1418
      %v1424 = vrot.slane %v1423, 4
      %v1426 = vshll.u32 %v361, 16
      %v1428 = vrot.slane %v1426, 5
      %v1429 = vsel %vm1045, %v1424, %v1428
      %v1431 = vshrl.u32 %v362, 16
      %v1433 = vrot.slane %v1431, 4
      %v1434 = vshll.u32 %v362, 16
      %v1436 = vrot.slane %v1434, 5
      %v1437 = vor.u32 %v1433, %v1436
      %v1438 = vrot.slane %v1437, 4
      %v1440 = vshll.u32 %v363, 16
      %v1442 = vrot.slane %v1440, 5
      %v1443 = vsel %vm1045, %v1438, %v1442
      %v1444 = vshrl.u32 %v363, 16
      %v1446 = vrot.slane %v1444, 4
      %v1447 = vor.u32 %v1446, %v1442
      %v1448 = vrot.slane %v1447, 4
      %v1450 = vshll.u32 %v364, 16
      %v1452 = vrot.slane %v1450, 5
      %v1453 = vsel %vm1045, %v1448, %v1452
      %v1455 = vshrl.u32 %v365, 16
      %v1457 = vrot.slane %v1455, 4
      %v1458 = vshll.u32 %v365, 16
      %v1460 = vrot.slane %v1458, 5
      %v1461 = vor.u32 %v1457, %v1460
      %v1462 = vrot.slane %v1461, 4
      %v1464 = vshll.u32 %v366, 16
      %v1466 = vrot.slane %v1464, 5
      %v1467 = vsel %vm1045, %v1462, %v1466
      %v1468 = vshrl.u32 %v366, 16
      %v1470 = vrot.slane %v1468, 4
      %v1471 = vor.u32 %v1470, %v1466
      %v1472 = vrot.slane %v1471, 4
      %v1474 = vshll.u32 %v367, 16
      %v1476 = vrot.slane %v1474, 5
      %v1477 = vsel %vm1045, %v1472, %v1476
      %s1478 = scalar_lea.vmem [#allocation2], 2
      %v1479 = vld [vmem:[%s1478] sm:$0x3]
      %v1480 = vunpack.c.l.b16 %v1059
      %v1481 = vunpack.c.l.b16 %v1069
      %v1482 = vunpack.c.l.b16 %v1083
      %v1483 = vunpack.c.l.b16 %v1093
      %v1484 = vunpack.c.l.b16 %v1107
      %v1485 = vunpack.c.l.b16 %v1117
      %v1486 = vunpack.c.l.b16 %v1131
      %v1487 = vunpack.c.l.b16 %v1141
      %v1488 = vunpack.c.l.b16 %v1155
      %v1489 = vunpack.c.l.b16 %v1165
      %v1490 = vunpack.c.l.b16 %v1179
      %v1491 = vunpack.c.l.b16 %v1189
      %v1492 = vunpack.c.l.b16 %v1203
      %v1493 = vunpack.c.l.b16 %v1213
      %v1494 = vunpack.c.l.b16 %v1227
      %v1495 = vunpack.c.l.b16 %v1237
      %v1496 = vunpack.c.l.b16 %v1251
      %v1497 = vunpack.c.l.b16 %v1261
      %v1498 = vunpack.c.l.b16 %v1275
      %v1499 = vunpack.c.l.b16 %v1285
      %v1500 = vunpack.c.l.b16 %v1299
      %v1501 = vunpack.c.l.b16 %v1309
      %v1502 = vunpack.c.l.b16 %v1323
      %v1503 = vunpack.c.l.b16 %v1333
      %v1504 = vunpack.c.l.b16 %v1347
      %v1505 = vunpack.c.l.b16 %v1357
      %v1506 = vunpack.c.l.b16 %v1371
      %v1507 = vunpack.c.l.b16 %v1381
      %v1508 = vunpack.c.l.b16 %v1395
      %v1509 = vunpack.c.l.b16 %v1405
      %v1510 = vunpack.c.l.b16 %v1419
      %v1511 = vunpack.c.l.b16 %v1429
      %v1512 = vpack.c.b16 %v1481, %v1480
      %v1513 = vpack.c.b16 %v1483, %v1482
      %v1514 = vpack.c.b16 %v1485, %v1484
      %v1515 = vpack.c.b16 %v1487, %v1486
      %v1516 = vpack.c.b16 %v1489, %v1488
      %v1517 = vpack.c.b16 %v1491, %v1490
      %v1518 = vpack.c.b16 %v1493, %v1492
      %v1519 = vpack.c.b16 %v1495, %v1494
      %v1520 = vpack.c.b16 %v1497, %v1496
      %v1521 = vpack.c.b16 %v1499, %v1498
      %v1522 = vpack.c.b16 %v1501, %v1500
      %v1523 = vpack.c.b16 %v1503, %v1502
      %v1524 = vpack.c.b16 %v1505, %v1504
      %v1525 = vpack.c.b16 %v1507, %v1506
      %v1526 = vpack.c.b16 %v1509, %v1508
      %v1527 = vpack.c.b16 %v1511, %v1510
      %v1529 = vsel %vm451, %v1512, 0
      %v1532 = vsel %vm451, %v1513, 0
      %v1535 = vsel %vm451, %v1514, 0
      %v1538 = vsel %vm451, %v1515, 0
      %v1541 = vsel %vm451, %v1516, 0
      %v1544 = vsel %vm451, %v1517, 0
      %v1547 = vsel %vm451, %v1518, 0
      %v1550 = vsel %vm451, %v1519, 0
      %v1553 = vsel %vm451, %v1520, 0
      %v1556 = vsel %vm451, %v1521, 0
      %v1559 = vsel %vm451, %v1522, 0
      %v1562 = vsel %vm451, %v1523, 0
      %v1565 = vsel %vm451, %v1524, 0
      %v1568 = vsel %vm451, %v1525, 0
      %v1571 = vsel %vm451, %v1526, 0
      %v1574 = vsel %vm451, %v1527, 0
      %v1577 = vsel %vm500, %v1479, 0
      %1579 = vmatprep.subr.bf16.mxu0 0
      %1580 = vmatpush1.bf16.msra.mxu0 %v1577
      %1581 = vmatprep.subr.bf16.mxu0 0
      %1582 = vmatpush1.bf16.msra.mxu0 0
      %1583 = vmatprep.subr.bf16.mxu0 0
      %1584 = vmatpush1.bf16.msra.mxu0 0
      %1585 = vmatprep.subr.bf16.mxu0 0
      %1586 = vmatpush1.bf16.msra.mxu0 0
      %1587 = vmatprep.subr.bf16.mxu0 0
      %1588 = vmatpush1.bf16.msra.mxu0 0
      %1589 = vmatprep.subr.bf16.mxu0 0
      %1590 = vmatpush1.bf16.msra.mxu0 0
      %1591 = vmatprep.subr.bf16.mxu0 0
      %1592 = vmatpush1.bf16.msra.mxu0 0
      %1593 = vmatprep.subr.bf16.mxu0 0
      %1594 = vmatpush1.bf16.msra.mxu0 0
      %1595 = vmatprep.subr.bf16.mxu0 0
      %1596 = vmatpush1.bf16.msra.mxu0 0
      %1597 = vmatprep.subr.bf16.mxu0 0
      %1598 = vmatpush1.bf16.msra.mxu0 0
      %1599 = vmatprep.subr.bf16.mxu0 0
      %1600 = vmatpush1.bf16.msra.mxu0 0
      %1601 = vmatprep.subr.bf16.mxu0 0
      %1602 = vmatpush1.bf16.msra.mxu0 0
      %1603 = vmatprep.subr.bf16.mxu0 0
      %1604 = vmatpush1.bf16.msra.mxu0 0
      %1605 = vmatprep.subr.bf16.mxu0 0
      %1606 = vmatpush1.bf16.msra.mxu0 0
      %1607 = vmatprep.subr.bf16.mxu0 0
      %1608 = vmatpush1.bf16.msra.mxu0 0
      %1609 = vmatprep.subr.bf16.mxu0 0
      %1610 = vmatpush1.bf16.msra.mxu0 0
      %1611 = vmatprep.mubr.bf16.mxu0 0
      %1612 = vmatmul.mubr.bf16.gmra.mrb[0].mxu0 %v1529
      %v1613 = vpop.f32.mrb[0].mxu0
      %v1614 = vadd.f32 0.0, %v1613
      %v1615 = vpop.f32.mrb[0].mxu0
      %v1616 = vpop.f32.mrb[0].mxu0
      %v1617 = vadd.f32 0.0, %v1616
      %v1618 = vpop.f32.mrb[0].mxu0
      %1619 = vmatprep.mubr.bf16.mxu0 0
      %1620 = vmatmul.mubr.bf16.gmra.mrb[0].mxu0 %v1532
      %v1621 = vpop.f32.mrb[0].mxu0
      %v1622 = vadd.f32 0.0, %v1621
      %v1623 = vpop.f32.mrb[0].mxu0
      %v1624 = vpop.f32.mrb[0].mxu0
      %v1625 = vadd.f32 0.0, %v1624
      %v1626 = vpop.f32.mrb[0].mxu0
      %1627 = vmatprep.mubr.bf16.mxu0 0
      %1628 = vmatmul.mubr.bf16.gmra.mrb[0].mxu0 %v1535
      %v1629 = vpop.f32.mrb[0].mxu0
      %v1630 = vadd.f32 0.0, %v1629
      %v1631 = vpop.f32.mrb[0].mxu0
      %v1632 = vpop.f32.mrb[0].mxu0
      %v1633 = vadd.f32 0.0, %v1632
      %v1634 = vpop.f32.mrb[0].mxu0
      %1635 = vmatprep.mubr.bf16.mxu0 0
      %1636 = vmatmul.mubr.bf16.gmra.mrb[0].mxu0 %v1538
      %v1637 = vpop.f32.mrb[0].mxu0
      %v1638 = vadd.f32 0.0, %v1637
      %v1639 = vpop.f32.mrb[0].mxu0
      %v1640 = vpop.f32.mrb[0].mxu0
      %v1641 = vadd.f32 0.0, %v1640
      %v1642 = vpop.f32.mrb[0].mxu0
      %1643 = vmatprep.mubr.bf16.mxu0 0
      %1644 = vmatmul.mubr.bf16.gmra.mrb[0].mxu0 %v1541
      %v1645 = vpop.f32.mrb[0].mxu0
      %v1646 = vadd.f32 0.0, %v1645
      %v1647 = vpop.f32.mrb[0].mxu0
      %v1648 = vpop.f32.mrb[0].mxu0
      %v1649 = vadd.f32 0.0, %v1648
      %v1650 = vpop.f32.mrb[0].mxu0
      %1651 = vmatprep.mubr.bf16.mxu0 0
      %1652 = vmatmul.mubr.bf16.gmra.mrb[0].mxu0 %v1544
      %v1653 = vpop.f32.mrb[0].mxu0
      %v1654 = vadd.f32 0.0, %v1653
      %v1655 = vpop.f32.mrb[0].mxu0
      %v1656 = vpop.f32.mrb[0].mxu0
      %v1657 = vadd.f32 0.0, %v1656
      %v1658 = vpop.f32.mrb[0].mxu0
      %1659 = vmatprep.mubr.bf16.mxu0 0
      %1660 = vmatmul.mubr.bf16.gmra.mrb[0].mxu0 %v1547
      %v1661 = vpop.f32.mrb[0].mxu0
      %v1662 = vadd.f32 0.0, %v1661
      %v1663 = vpop.f32.mrb[0].mxu0
      %v1664 = vpop.f32.mrb[0].mxu0
      %v1665 = vadd.f32 0.0, %v1664
      %v1666 = vpop.f32.mrb[0].mxu0
      %1667 = vmatprep.mubr.bf16.mxu0 0
      %1668 = vmatmul.mubr.bf16.gmra.mrb[0].mxu0 %v1550
      %v1669 = vpop.f32.mrb[0].mxu0
      %v1670 = vadd.f32 0.0, %v1669
      %v1671 = vpop.f32.mrb[0].mxu0
      %v1672 = vpop.f32.mrb[0].mxu0
      %v1673 = vadd.f32 0.0, %v1672
      %v1674 = vpop.f32.mrb[0].mxu0
      %1675 = vmatprep.mubr.bf16.mxu0 0
      %1676 = vmatmul.mubr.bf16.gmra.mrb[0].mxu0 %v1553
      %v1677 = vpop.f32.mrb[0].mxu0
      %v1678 = vadd.f32 0.0, %v1677
      %v1679 = vpop.f32.mrb[0].mxu0
      %v1680 = vpop.f32.mrb[0].mxu0
      %v1681 = vadd.f32 0.0, %v1680
      %v1682 = vpop.f32.mrb[0].mxu0
      %1683 = vmatprep.mubr.bf16.mxu0 0
      %1684 = vmatmul.mubr.bf16.gmra.mrb[0].mxu0 %v1556
      %v1685 = vpop.f32.mrb[0].mxu0
      %v1686 = vadd.f32 0.0, %v1685
      %v1687 = vpop.f32.mrb[0].mxu0
      %v1688 = vpop.f32.mrb[0].mxu0
      %v1689 = vadd.f32 0.0, %v1688
      %v1690 = vpop.f32.mrb[0].mxu0
      %1691 = vmatprep.mubr.bf16.mxu0 0
      %1692 = vmatmul.mubr.bf16.gmra.mrb[0].mxu0 %v1559
      %v1693 = vpop.f32.mrb[0].mxu0
      %v1694 = vadd.f32 0.0, %v1693
      %v1695 = vpop.f32.mrb[0].mxu0
      %v1696 = vpop.f32.mrb[0].mxu0
      %v1697 = vadd.f32 0.0, %v1696
      %v1698 = vpop.f32.mrb[0].mxu0
      %1699 = vmatprep.mubr.bf16.mxu0 0
      %1700 = vmatmul.mubr.bf16.gmra.mrb[0].mxu0 %v1562
      %v1701 = vpop.f32.mrb[0].mxu0
      %v1702 = vadd.f32 0.0, %v1701
      %v1703 = vpop.f32.mrb[0].mxu0
      %v1704 = vpop.f32.mrb[0].mxu0
      %v1705 = vadd.f32 0.0, %v1704
      %v1706 = vpop.f32.mrb[0].mxu0
      %1707 = vmatprep.mubr.bf16.mxu0 0
      %1708 = vmatmul.mubr.bf16.gmra.mrb[0].mxu0 %v1565
      %v1709 = vpop.f32.mrb[0].mxu0
      %v1710 = vadd.f32 0.0, %v1709
      %v1711 = vpop.f32.mrb[0].mxu0
      %v1712 = vpop.f32.mrb[0].mxu0
      %v1713 = vadd.f32 0.0, %v1712
      %v1714 = vpop.f32.mrb[0].mxu0
      %1715 = vmatprep.mubr.bf16.mxu0 0
      %1716 = vmatmul.mubr.bf16.gmra.mrb[0].mxu0 %v1568
      %v1717 = vpop.f32.mrb[0].mxu0
      %v1718 = vadd.f32 0.0, %v1717
      %v1719 = vpop.f32.mrb[0].mxu0
      %v1720 = vpop.f32.mrb[0].mxu0
      %v1721 = vadd.f32 0.0, %v1720
      %v1722 = vpop.f32.mrb[0].mxu0
      %1723 = vmatprep.mubr.bf16.mxu0 0
      %1724 = vmatmul.mubr.bf16.gmra.mrb[0].mxu0 %v1571
      %v1725 = vpop.f32.mrb[0].mxu0
      %v1726 = vadd.f32 0.0, %v1725
      %v1727 = vpop.f32.mrb[0].mxu0
      %v1728 = vpop.f32.mrb[0].mxu0
      %v1729 = vadd.f32 0.0, %v1728
      %v1730 = vpop.f32.mrb[0].mxu0
      %1731 = vmatprep.mubr.bf16.mxu0 0
      %1732 = vmatmul.mubr.bf16.gmra.mrb[0].mxu0 %v1574
      %v1733 = vpop.f32.mrb[0].mxu0
      %v1734 = vadd.f32 0.0, %v1733
      %v1735 = vpop.f32.mrb[0].mxu0
      %v1736 = vpop.f32.mrb[0].mxu0
      %v1737 = vadd.f32 0.0, %v1736
      %v1738 = vpop.f32.mrb[0].mxu0
      %1739 = vdwg.mxu0
      %v1740 = vadd.f32 %v1011, %v1614
      %v1741 = vadd.f32 %v1012, %v1617
      %v1742 = vadd.f32 %v1013, %v1622
      %v1743 = vadd.f32 %v1014, %v1625
      %v1744 = vadd.f32 %v1015, %v1630
      %v1745 = vadd.f32 %v1016, %v1633
      %v1746 = vadd.f32 %v1017, %v1638
      %v1747 = vadd.f32 %v1018, %v1641
      %v1748 = vadd.f32 %v1019, %v1646
      %v1749 = vadd.f32 %v1020, %v1649
      %v1750 = vadd.f32 %v1021, %v1654
      %v1751 = vadd.f32 %v1022, %v1657
      %v1752 = vadd.f32 %v1023, %v1662
      %v1753 = vadd.f32 %v1024, %v1665
      %v1754 = vadd.f32 %v1025, %v1670
      %v1755 = vadd.f32 %v1026, %v1673
      %v1756 = vadd.f32 %v1027, %v1678
      %v1757 = vadd.f32 %v1028, %v1681
      %v1758 = vadd.f32 %v1029, %v1686
      %v1759 = vadd.f32 %v1030, %v1689
      %v1760 = vadd.f32 %v1031, %v1694
      %v1761 = vadd.f32 %v1032, %v1697
      %v1762 = vadd.f32 %v1033, %v1702
      %v1763 = vadd.f32 %v1034, %v1705
      %v1764 = vadd.f32 %v1035, %v1710
      %v1765 = vadd.f32 %v1036, %v1713
      %v1766 = vadd.f32 %v1037, %v1718
      %v1767 = vadd.f32 %v1038, %v1721
      %v1768 = vadd.f32 %v1039, %v1726
      %v1769 = vadd.f32 %v1040, %v1729
      %v1770 = vadd.f32 %v1041, %v1734
      %v1771 = vadd.f32 %v1042, %v1737
      %s1772 = scalar_lea.vmem [#allocation2], 8
      %v1773 = vld [vmem:[%s1772] sm:$0x3]
      %v1774 = vunpack.c.l.b16 %v1443
      %v1775 = vunpack.c.l.b16 %v1453
      %v1776 = vpack.c.b16 %v1775, %v1774
      %v1778 = vsel %vm451, %v1776, 0
      %v1781 = vsel %vm500, %v1773, 0
      %1783 = vmatprep.subr.bf16.mxu0 0
      %1784 = vmatpush1.bf16.msra.mxu0 %v1781
      %1785 = vmatprep.subr.bf16.mxu0 0
      %1786 = vmatpush1.bf16.msra.mxu0 0
      %1787 = vmatprep.subr.bf16.mxu0 0
      %1788 = vmatpush1.bf16.msra.mxu0 0
      %1789 = vmatprep.subr.bf16.mxu0 0
      %1790 = vmatpush1.bf16.msra.mxu0 0
      %1791 = vmatprep.subr.bf16.mxu0 0
      %1792 = vmatpush1.bf16.msra.mxu0 0
      %1793 = vmatprep.subr.bf16.mxu0 0
      %1794 = vmatpush1.bf16.msra.mxu0 0
      %1795 = vmatprep.subr.bf16.mxu0 0
      %1796 = vmatpush1.bf16.msra.mxu0 0
      %1797 = vmatprep.subr.bf16.mxu0 0
      %1798 = vmatpush1.bf16.msra.mxu0 0
      %1799 = vmatprep.subr.bf16.mxu0 0
      %1800 = vmatpush1.bf16.msra.mxu0 0
      %1801 = vmatprep.subr.bf16.mxu0 0
      %1802 = vmatpush1.bf16.msra.mxu0 0
      %1803 = vmatprep.subr.bf16.mxu0 0
      %1804 = vmatpush1.bf16.msra.mxu0 0
      %1805 = vmatprep.subr.bf16.mxu0 0
      %1806 = vmatpush1.bf16.msra.mxu0 0
      %1807 = vmatprep.subr.bf16.mxu0 0
      %1808 = vmatpush1.bf16.msra.mxu0 0
      %1809 = vmatprep.subr.bf16.mxu0 0
      %1810 = vmatpush1.bf16.msra.mxu0 0
      %1811 = vmatprep.subr.bf16.mxu0 0
      %1812 = vmatpush1.bf16.msra.mxu0 0
      %1813 = vmatprep.subr.bf16.mxu0 0
      %1814 = vmatpush1.bf16.msra.mxu0 0
      %1815 = vmatprep.mubr.bf16.mxu0 0
      %1816 = vmatmul.mubr.bf16.gmra.mrb[0].mxu0 %v1532
      %v1817 = vpop.f32.mrb[0].mxu0
      %v1818 = vadd.f32 0.0, %v1817
      %v1819 = vpop.f32.mrb[0].mxu0
      %v1820 = vpop.f32.mrb[0].mxu0
      %v1821 = vadd.f32 0.0, %v1820
      %v1822 = vpop.f32.mrb[0].mxu0
      %1823 = vmatprep.mubr.bf16.mxu0 0
      %1824 = vmatmul.mubr.bf16.gmra.mrb[0].mxu0 %v1535
      %v1825 = vpop.f32.mrb[0].mxu0
      %v1826 = vadd.f32 0.0, %v1825
      %v1827 = vpop.f32.mrb[0].mxu0
      %v1828 = vpop.f32.mrb[0].mxu0
      %v1829 = vadd.f32 0.0, %v1828
      %v1830 = vpop.f32.mrb[0].mxu0
      %1831 = vmatprep.mubr.bf16.mxu0 0
      %1832 = vmatmul.mubr.bf16.gmra.mrb[0].mxu0 %v1538
      %v1833 = vpop.f32.mrb[0].mxu0
      %v1834 = vadd.f32 0.0, %v1833
      %v1835 = vpop.f32.mrb[0].mxu0
      %v1836 = vpop.f32.mrb[0].mxu0
      %v1837 = vadd.f32 0.0, %v1836
      %v1838 = vpop.f32.mrb[0].mxu0
      %1839 = vmatprep.mubr.bf16.mxu0 0
      %1840 = vmatmul.mubr.bf16.gmra.mrb[0].mxu0 %v1541
      %v1841 = vpop.f32.mrb[0].mxu0
      %v1842 = vadd.f32 0.0, %v1841
      %v1843 = vpop.f32.mrb[0].mxu0
      %v1844 = vpop.f32.mrb[0].mxu0
      %v1845 = vadd.f32 0.0, %v1844
      %v1846 = vpop.f32.mrb[0].mxu0
      %1847 = vmatprep.mubr.bf16.mxu0 0
      %1848 = vmatmul.mubr.bf16.gmra.mrb[0].mxu0 %v1544
      %v1849 = vpop.f32.mrb[0].mxu0
      %v1850 = vadd.f32 0.0, %v1849
      %v1851 = vpop.f32.mrb[0].mxu0
      %v1852 = vpop.f32.mrb[0].mxu0
      %v1853 = vadd.f32 0.0, %v1852
      %v1854 = vpop.f32.mrb[0].mxu0
      %1855 = vmatprep.mubr.bf16.mxu0 0
      %1856 = vmatmul.mubr.bf16.gmra.mrb[0].mxu0 %v1547
      %v1857 = vpop.f32.mrb[0].mxu0
      %v1858 = vadd.f32 0.0, %v1857
      %v1859 = vpop.f32.mrb[0].mxu0
      %v1860 = vpop.f32.mrb[0].mxu0
      %v1861 = vadd.f32 0.0, %v1860
      %v1862 = vpop.f32.mrb[0].mxu0
      %1863 = vmatprep.mubr.bf16.mxu0 0
      %1864 = vmatmul.mubr.bf16.gmra.mrb[0].mxu0 %v1550
      %v1865 = vpop.f32.mrb[0].mxu0
      %v1866 = vadd.f32 0.0, %v1865
      %v1867 = vpop.f32.mrb[0].mxu0
      %v1868 = vpop.f32.mrb[0].mxu0
      %v1869 = vadd.f32 0.0, %v1868
      %v1870 = vpop.f32.mrb[0].mxu0
      %1871 = vmatprep.mubr.bf16.mxu0 0
      %1872 = vmatmul.mubr.bf16.gmra.mrb[0].mxu0 %v1553
      %v1873 = vpop.f32.mrb[0].mxu0
      %v1874 = vadd.f32 0.0, %v1873
      %v1875 = vpop.f32.mrb[0].mxu0
      %v1876 = vpop.f32.mrb[0].mxu0
      %v1877 = vadd.f32 0.0, %v1876
      %v1878 = vpop.f32.mrb[0].mxu0
      %1879 = vmatprep.mubr.bf16.mxu0 0
      %1880 = vmatmul.mubr.bf16.gmra.mrb[0].mxu0 %v1556
      %v1881 = vpop.f32.mrb[0].mxu0
      %v1882 = vadd.f32 0.0, %v1881
      %v1883 = vpop.f32.mrb[0].mxu0
      %v1884 = vpop.f32.mrb[0].mxu0
      %v1885 = vadd.f32 0.0, %v1884
      %v1886 = vpop.f32.mrb[0].mxu0
      %1887 = vmatprep.mubr.bf16.mxu0 0
      %1888 = vmatmul.mubr.bf16.gmra.mrb[0].mxu0 %v1559
      %v1889 = vpop.f32.mrb[0].mxu0
      %v1890 = vadd.f32 0.0, %v1889
      %v1891 = vpop.f32.mrb[0].mxu0
      %v1892 = vpop.f32.mrb[0].mxu0
      %v1893 = vadd.f32 0.0, %v1892
      %v1894 = vpop.f32.mrb[0].mxu0
      %1895 = vmatprep.mubr.bf16.mxu0 0
      %1896 = vmatmul.mubr.bf16.gmra.mrb[0].mxu0 %v1562
      %v1897 = vpop.f32.mrb[0].mxu0
      %v1898 = vadd.f32 0.0, %v1897
      %v1899 = vpop.f32.mrb[0].mxu0
      %v1900 = vpop.f32.mrb[0].mxu0
      %v1901 = vadd.f32 0.0, %v1900
      %v1902 = vpop.f32.mrb[0].mxu0
      %1903 = vmatprep.mubr.bf16.mxu0 0
      %1904 = vmatmul.mubr.bf16.gmra.mrb[0].mxu0 %v1565
      %v1905 = vpop.f32.mrb[0].mxu0
      %v1906 = vadd.f32 0.0, %v1905
      %v1907 = vpop.f32.mrb[0].mxu0
      %v1908 = vpop.f32.mrb[0].mxu0
      %v1909 = vadd.f32 0.0, %v1908
      %v1910 = vpop.f32.mrb[0].mxu0
      %1911 = vmatprep.mubr.bf16.mxu0 0
      %1912 = vmatmul.mubr.bf16.gmra.mrb[0].mxu0 %v1568
      %v1913 = vpop.f32.mrb[0].mxu0
      %v1914 = vadd.f32 0.0, %v1913
      %v1915 = vpop.f32.mrb[0].mxu0
      %v1916 = vpop.f32.mrb[0].mxu0
      %v1917 = vadd.f32 0.0, %v1916
      %v1918 = vpop.f32.mrb[0].mxu0
      %1919 = vmatprep.mubr.bf16.mxu0 0
      %1920 = vmatmul.mubr.bf16.gmra.mrb[0].mxu0 %v1571
      %v1921 = vpop.f32.mrb[0].mxu0
      %v1922 = vadd.f32 0.0, %v1921
      %v1923 = vpop.f32.mrb[0].mxu0
      %v1924 = vpop.f32.mrb[0].mxu0
      %v1925 = vadd.f32 0.0, %v1924
      %v1926 = vpop.f32.mrb[0].mxu0
      %1927 = vmatprep.mubr.bf16.mxu0 0
      %1928 = vmatmul.mubr.bf16.gmra.mrb[0].mxu0 %v1574
      %v1929 = vpop.f32.mrb[0].mxu0
      %v1930 = vadd.f32 0.0, %v1929
      %v1931 = vpop.f32.mrb[0].mxu0
      %v1932 = vpop.f32.mrb[0].mxu0
      %v1933 = vadd.f32 0.0, %v1932
      %v1934 = vpop.f32.mrb[0].mxu0
      %1935 = vmatprep.mubr.bf16.mxu0 0
      %1936 = vmatmul.mubr.bf16.gmra.mrb[0].mxu0 %v1778
      %v1937 = vpop.f32.mrb[0].mxu0
      %v1938 = vadd.f32 0.0, %v1937
      %v1939 = vpop.f32.mrb[0].mxu0
      %v1940 = vpop.f32.mrb[0].mxu0
      %v1941 = vadd.f32 0.0, %v1940
      %v1942 = vpop.f32.mrb[0].mxu0
      %1943 = vdwg.mxu0
      %v1944 = vadd.f32 %v1740, %v1818
      %v1945 = vadd.f32 %v1741, %v1821
      %v1946 = vadd.f32 %v1742, %v1826
      %v1947 = vadd.f32 %v1743, %v1829
      %v1948 = vadd.f32 %v1744, %v1834
      %v1949 = vadd.f32 %v1745, %v1837
      %v1950 = vadd.f32 %v1746, %v1842
      %v1951 = vadd.f32 %v1747, %v1845
      %v1952 = vadd.f32 %v1748, %v1850
      %v1953 = vadd.f32 %v1749, %v1853
      %v1954 = vadd.f32 %v1750, %v1858
      %v1955 = vadd.f32 %v1751, %v1861
      %v1956 = vadd.f32 %v1752, %v1866
      %v1957 = vadd.f32 %v1753, %v1869
      %v1958 = vadd.f32 %v1754, %v1874
      %v1959 = vadd.f32 %v1755, %v1877
      %v1960 = vadd.f32 %v1756, %v1882
      %v1961 = vadd.f32 %v1757, %v1885
      %v1962 = vadd.f32 %v1758, %v1890
      %v1963 = vadd.f32 %v1759, %v1893
      %v1964 = vadd.f32 %v1760, %v1898
      %v1965 = vadd.f32 %v1761, %v1901
      %v1966 = vadd.f32 %v1762, %v1906
      %v1967 = vadd.f32 %v1763, %v1909
      %v1968 = vadd.f32 %v1764, %v1914
      %v1969 = vadd.f32 %v1765, %v1917
      %v1970 = vadd.f32 %v1766, %v1922
      %v1971 = vadd.f32 %v1767, %v1925
      %v1972 = vadd.f32 %v1768, %v1930
      %v1973 = vadd.f32 %v1769, %v1933
      %v1974 = vadd.f32 %v1770, %v1938
      %v1975 = vadd.f32 %v1771, %v1941
      %s1976 = scalar_lea.vmem [#allocation2], 14
      %v1977 = vld [vmem:[%s1976] sm:$0x3]
      %v1978 = vunpack.c.l.b16 %v1467
      %v1979 = vunpack.c.l.b16 %v1477
      %v1980 = vpack.c.b16 %v1979, %v1978
      %v1982 = vsel %vm451, %v1980, 0
      %v1985 = vsel %vm500, %v1977, 0
      %1987 = vmatprep.subr.bf16.mxu0 0
      %1988 = vmatpush1.bf16.msra.mxu0 %v1985
      %1989 = vmatprep.subr.bf16.mxu0 0
      %1990 = vmatpush1.bf16.msra.mxu0 0
      %1991 = vmatprep.subr.bf16.mxu0 0
      %1992 = vmatpush1.bf16.msra.mxu0 0
      %1993 = vmatprep.subr.bf16.mxu0 0
      %1994 = vmatpush1.bf16.msra.mxu0 0
      %1995 = vmatprep.subr.bf16.mxu0 0
      %1996 = vmatpush1.bf16.msra.mxu0 0
      %1997 = vmatprep.subr.bf16.mxu0 0
      %1998 = vmatpush1.bf16.msra.mxu0 0
      %1999 = vmatprep.subr.bf16.mxu0 0
      %2000 = vmatpush1.bf16.msra.mxu0 0
      %2001 = vmatprep.subr.bf16.mxu0 0
      %2002 = vmatpush1.bf16.msra.mxu0 0
      %2003 = vmatprep.subr.bf16.mxu0 0
      %2004 = vmatpush1.bf16.msra.mxu0 0
      %2005 = vmatprep.subr.bf16.mxu0 0
      %2006 = vmatpush1.bf16.msra.mxu0 0
      %2007 = vmatprep.subr.bf16.mxu0 0
      %2008 = vmatpush1.bf16.msra.mxu0 0
      %2009 = vmatprep.subr.bf16.mxu0 0
      %2010 = vmatpush1.bf16.msra.mxu0 0
      %2011 = vmatprep.subr.bf16.mxu0 0
      %2012 = vmatpush1.bf16.msra.mxu0 0
      %2013 = vmatprep.subr.bf16.mxu0 0
      %2014 = vmatpush1.bf16.msra.mxu0 0
      %2015 = vmatprep.subr.bf16.mxu0 0
      %2016 = vmatpush1.bf16.msra.mxu0 0
      %2017 = vmatprep.subr.bf16.mxu0 0
      %2018 = vmatpush1.bf16.msra.mxu0 0
      %2019 = vmatprep.mubr.bf16.mxu0 0
      %2020 = vmatmul.mubr.bf16.gmra.mrb[0].mxu0 %v1535
      %v2021 = vpop.f32.mrb[0].mxu0
      %v2022 = vadd.f32 0.0, %v2021
      %v2023 = vpop.f32.mrb[0].mxu0
      %v2024 = vpop.f32.mrb[0].mxu0
      %v2025 = vadd.f32 0.0, %v2024
      %v2026 = vpop.f32.mrb[0].mxu0
      %2027 = vmatprep.mubr.bf16.mxu0 0
      %2028 = vmatmul.mubr.bf16.gmra.mrb[0].mxu0 %v1538
      %v2029 = vpop.f32.mrb[0].mxu0
      %v2030 = vadd.f32 0.0, %v2029
      %v2031 = vpop.f32.mrb[0].mxu0
      %v2032 = vpop.f32.mrb[0].mxu0
      %v2033 = vadd.f32 0.0, %v2032
      %v2034 = vpop.f32.mrb[0].mxu0
      %2035 = vmatprep.mubr.bf16.mxu0 0
      %2036 = vmatmul.mubr.bf16.gmra.mrb[0].mxu0 %v1541
      %v2037 = vpop.f32.mrb[0].mxu0
      %v2038 = vadd.f32 0.0, %v2037
      %v2039 = vpop.f32.mrb[0].mxu0
      %v2040 = vpop.f32.mrb[0].mxu0
      %v2041 = vadd.f32 0.0, %v2040
      %v2042 = vpop.f32.mrb[0].mxu0
      %2043 = vmatprep.mubr.bf16.mxu0 0
      %2044 = vmatmul.mubr.bf16.gmra.mrb[0].mxu0 %v1544
      %v2045 = vpop.f32.mrb[0].mxu0
      %v2046 = vadd.f32 0.0, %v2045
      %v2047 = vpop.f32.mrb[0].mxu0
      %v2048 = vpop.f32.mrb[0].mxu0
      %v2049 = vadd.f32 0.0, %v2048
      %v2050 = vpop.f32.mrb[0].mxu0
      %2051 = vmatprep.mubr.bf16.mxu0 0
      %2052 = vmatmul.mubr.bf16.gmra.mrb[0].mxu0 %v1547
      %v2053 = vpop.f32.mrb[0].mxu0
      %v2054 = vadd.f32 0.0, %v2053
      %v2055 = vpop.f32.mrb[0].mxu0
      %v2056 = vpop.f32.mrb[0].mxu0
      %v2057 = vadd.f32 0.0, %v2056
      %v2058 = vpop.f32.mrb[0].mxu0
      %2059 = vmatprep.mubr.bf16.mxu0 0
      %2060 = vmatmul.mubr.bf16.gmra.mrb[0].mxu0 %v1550
      %v2061 = vpop.f32.mrb[0].mxu0
      %v2062 = vadd.f32 0.0, %v2061
      %v2063 = vpop.f32.mrb[0].mxu0
      %v2064 = vpop.f32.mrb[0].mxu0
      %v2065 = vadd.f32 0.0, %v2064
      %v2066 = vpop.f32.mrb[0].mxu0
      %2067 = vmatprep.mubr.bf16.mxu0 0
      %2068 = vmatmul.mubr.bf16.gmra.mrb[0].mxu0 %v1553
      %v2069 = vpop.f32.mrb[0].mxu0
      %v2070 = vadd.f32 0.0, %v2069
      %v2071 = vpop.f32.mrb[0].mxu0
      %v2072 = vpop.f32.mrb[0].mxu0
      %v2073 = vadd.f32 0.0, %v2072
      %v2074 = vpop.f32.mrb[0].mxu0
      %2075 = vmatprep.mubr.bf16.mxu0 0
      %2076 = vmatmul.mubr.bf16.gmra.mrb[0].mxu0 %v1556
      %v2077 = vpop.f32.mrb[0].mxu0
      %v2078 = vadd.f32 0.0, %v2077
      %v2079 = vpop.f32.mrb[0].mxu0
      %v2080 = vpop.f32.mrb[0].mxu0
      %v2081 = vadd.f32 0.0, %v2080
      %v2082 = vpop.f32.mrb[0].mxu0
      %2083 = vmatprep.mubr.bf16.mxu0 0
      %2084 = vmatmul.mubr.bf16.gmra.mrb[0].mxu0 %v1559
      %v2085 = vpop.f32.mrb[0].mxu0
      %v2086 = vadd.f32 0.0, %v2085
      %v2087 = vpop.f32.mrb[0].mxu0
      %v2088 = vpop.f32.mrb[0].mxu0
      %v2089 = vadd.f32 0.0, %v2088
      %v2090 = vpop.f32.mrb[0].mxu0
      %2091 = vmatprep.mubr.bf16.mxu0 0
      %2092 = vmatmul.mubr.bf16.gmra.mrb[0].mxu0 %v1562
      %v2093 = vpop.f32.mrb[0].mxu0
      %v2094 = vadd.f32 0.0, %v2093
      %v2095 = vpop.f32.mrb[0].mxu0
      %v2096 = vpop.f32.mrb[0].mxu0
      %v2097 = vadd.f32 0.0, %v2096
      %v2098 = vpop.f32.mrb[0].mxu0
      %2099 = vmatprep.mubr.bf16.mxu0 0
      %2100 = vmatmul.mubr.bf16.gmra.mrb[0].mxu0 %v1565
      %v2101 = vpop.f32.mrb[0].mxu0
      %v2102 = vadd.f32 0.0, %v2101
      %v2103 = vpop.f32.mrb[0].mxu0
      %v2104 = vpop.f32.mrb[0].mxu0
      %v2105 = vadd.f32 0.0, %v2104
      %v2106 = vpop.f32.mrb[0].mxu0
      %2107 = vmatprep.mubr.bf16.mxu0 0
      %2108 = vmatmul.mubr.bf16.gmra.mrb[0].mxu0 %v1568
      %v2109 = vpop.f32.mrb[0].mxu0
      %v2110 = vadd.f32 0.0, %v2109
      %v2111 = vpop.f32.mrb[0].mxu0
      %v2112 = vpop.f32.mrb[0].mxu0
      %v2113 = vadd.f32 0.0, %v2112
      %v2114 = vpop.f32.mrb[0].mxu0
      %2115 = vmatprep.mubr.bf16.mxu0 0
      %2116 = vmatmul.mubr.bf16.gmra.mrb[0].mxu0 %v1571
      %v2117 = vpop.f32.mrb[0].mxu0
      %v2118 = vadd.f32 0.0, %v2117
      %v2119 = vpop.f32.mrb[0].mxu0
      %v2120 = vpop.f32.mrb[0].mxu0
      %v2121 = vadd.f32 0.0, %v2120
      %v2122 = vpop.f32.mrb[0].mxu0
      %2123 = vmatprep.mubr.bf16.mxu0 0
      %2124 = vmatmul.mubr.bf16.gmra.mrb[0].mxu0 %v1574
      %v2125 = vpop.f32.mrb[0].mxu0
      %v2126 = vadd.f32 0.0, %v2125
      %v2127 = vpop.f32.mrb[0].mxu0
      %v2128 = vpop.f32.mrb[0].mxu0
      %v2129 = vadd.f32 0.0, %v2128
      %v2130 = vpop.f32.mrb[0].mxu0
      %2131 = vmatprep.mubr.bf16.mxu0 0
      %2132 = vmatmul.mubr.bf16.gmra.mrb[0].mxu0 %v1778
      %v2133 = vpop.f32.mrb[0].mxu0
      %v2134 = vadd.f32 0.0, %v2133
      %v2135 = vpop.f32.mrb[0].mxu0
      %v2136 = vpop.f32.mrb[0].mxu0
      %v2137 = vadd.f32 0.0, %v2136
      %v2138 = vpop.f32.mrb[0].mxu0
      %2139 = vmatprep.mubr.bf16.mxu0 0
      %2140 = vmatmul.mubr.bf16.gmra.mrb[0].mxu0 %v1982
      %v2141 = vpop.f32.mrb[0].mxu0
      %v2142 = vadd.f32 0.0, %v2141
      %v2143 = vpop.f32.mrb[0].mxu0
      %v2144 = vpop.f32.mrb[0].mxu0
      %v2145 = vadd.f32 0.0, %v2144
      %v2146 = vpop.f32.mrb[0].mxu0
      %2147 = vdwg.mxu0
      %v2148 = vadd.f32 %v1944, %v2022
      %v2149 = vadd.f32 %v1945, %v2025
      %v2150 = vadd.f32 %v1946, %v2030
      %v2151 = vadd.f32 %v1947, %v2033
      %v2152 = vadd.f32 %v1948, %v2038
      %v2153 = vadd.f32 %v1949, %v2041
      %v2154 = vadd.f32 %v1950, %v2046
      %v2155 = vadd.f32 %v1951, %v2049
      %v2156 = vadd.f32 %v1952, %v2054
      %v2157 = vadd.f32 %v1953, %v2057
      %v2158 = vadd.f32 %v1954, %v2062
      %v2159 = vadd.f32 %v1955, %v2065
      %v2160 = vadd.f32 %v1956, %v2070
      %v2161 = vadd.f32 %v1957, %v2073
      %v2162 = vadd.f32 %v1958, %v2078
      %v2163 = vadd.f32 %v1959, %v2081
      %v2164 = vadd.f32 %v1960, %v2086
      %v2165 = vadd.f32 %v1961, %v2089
      %v2166 = vadd.f32 %v1962, %v2094
      %v2167 = vadd.f32 %v1963, %v2097
      %v2168 = vadd.f32 %v1964, %v2102
      %v2169 = vadd.f32 %v1965, %v2105
      %v2170 = vadd.f32 %v1966, %v2110
      %v2171 = vadd.f32 %v1967, %v2113
      %v2172 = vadd.f32 %v1968, %v2118
      %v2173 = vadd.f32 %v1969, %v2121
      %v2174 = vadd.f32 %v1970, %v2126
      %v2175 = vadd.f32 %v1971, %v2129
      %v2176 = vadd.f32 %v1972, %v2134
      %v2177 = vadd.f32 %v1973, %v2137
      %v2178 = vadd.f32 %v1974, %v2142
      %v2179 = vadd.f32 %v1975, %v2145
      %vm2198 = vcmask 1042432
      %vm2199 = vcmask 1046532
      %vm2200 = vmor %vm2198, %vm2199
      %v2201 = vrot.slane %v314, 5
      %v2202 = vrot.slane %v2201, 4
      %v2203 = vrot.slane %v315, 5
      %v2204 = vsel %vm2200, %v2202, %v2203
      %v2205 = vrot.slane %v2203, 4
      %v2206 = vrot.slane %v316, 5
      %v2207 = vsel %vm2200, %v2205, %v2206
      %v2208 = vrot.slane %v317, 5
      %v2209 = vrot.slane %v2208, 4
      %v2210 = vrot.slane %v318, 5
      %v2211 = vsel %vm2200, %v2209, %v2210
      %v2212 = vrot.slane %v2210, 4
      %v2213 = vrot.slane %v319, 5
      %v2214 = vsel %vm2200, %v2212, %v2213
      %v2215 = vrot.slane %v320, 5
      %v2216 = vrot.slane %v2215, 4
      %v2217 = vrot.slane %v321, 5
      %v2218 = vsel %vm2200, %v2216, %v2217
      %v2219 = vrot.slane %v2217, 4
      %v2220 = vrot.slane %v322, 5
      %v2221 = vsel %vm2200, %v2219, %v2220
      %v2222 = vrot.slane %v323, 5
      %v2223 = vrot.slane %v2222, 4
      %v2224 = vrot.slane %v324, 5
      %v2225 = vsel %vm2200, %v2223, %v2224
      %v2226 = vrot.slane %v2224, 4
      %v2227 = vrot.slane %v325, 5
      %v2228 = vsel %vm2200, %v2226, %v2227
      %v2229 = vrot.slane %v326, 5
      %v2230 = vrot.slane %v2229, 4
      %v2231 = vrot.slane %v327, 5
      %v2232 = vsel %vm2200, %v2230, %v2231
      %v2233 = vrot.slane %v2231, 4
      %v2234 = vrot.slane %v328, 5
      %v2235 = vsel %vm2200, %v2233, %v2234
      %v2236 = vrot.slane %v329, 5
      %v2237 = vrot.slane %v2236, 4
      %v2238 = vrot.slane %v330, 5
      %v2239 = vsel %vm2200, %v2237, %v2238
      %v2240 = vrot.slane %v2238, 4
      %v2241 = vrot.slane %v331, 5
      %v2242 = vsel %vm2200, %v2240, %v2241
      %v2243 = vrot.slane %v332, 5
      %v2244 = vrot.slane %v2243, 4
      %v2245 = vrot.slane %v333, 5
      %v2246 = vsel %vm2200, %v2244, %v2245
      %v2247 = vrot.slane %v2245, 4
      %v2248 = vrot.slane %v334, 5
      %v2249 = vsel %vm2200, %v2247, %v2248
      %v2250 = vrot.slane %v335, 5
      %v2251 = vrot.slane %v2250, 4
      %v2252 = vrot.slane %v336, 5
      %v2253 = vsel %vm2200, %v2251, %v2252
      %v2254 = vrot.slane %v2252, 4
      %v2255 = vrot.slane %v337, 5
      %v2256 = vsel %vm2200, %v2254, %v2255
      %v2257 = vrot.slane %v338, 5
      %v2258 = vrot.slane %v2257, 4
      %v2259 = vrot.slane %v339, 5
      %v2260 = vsel %vm2200, %v2258, %v2259
      %v2261 = vrot.slane %v2259, 4
      %v2262 = vrot.slane %v340, 5
      %v2263 = vsel %vm2200, %v2261, %v2262
      %v2264 = vrot.slane %v341, 5
      %v2265 = vrot.slane %v2264, 4
      %v2266 = vrot.slane %v342, 5
      %v2267 = vsel %vm2200, %v2265, %v2266
      %v2268 = vrot.slane %v2266, 4
      %v2269 = vrot.slane %v343, 5
      %v2270 = vsel %vm2200, %v2268, %v2269
      %v2271 = vrot.slane %v344, 5
      %v2272 = vrot.slane %v2271, 4
      %v2273 = vrot.slane %v345, 5
      %v2274 = vsel %vm2200, %v2272, %v2273
      %v2275 = vrot.slane %v2273, 4
      %v2276 = vrot.slane %v346, 5
      %v2277 = vsel %vm2200, %v2275, %v2276
      %v2278 = vrot.slane %v347, 5
      %v2279 = vrot.slane %v2278, 4
      %v2280 = vrot.slane %v348, 5
      %v2281 = vsel %vm2200, %v2279, %v2280
      %v2282 = vrot.slane %v2280, 4
      %v2283 = vrot.slane %v349, 5
      %v2284 = vsel %vm2200, %v2282, %v2283
      %v2285 = vrot.slane %v350, 5
      %v2286 = vrot.slane %v2285, 4
      %v2287 = vrot.slane %v351, 5
      %v2288 = vsel %vm2200, %v2286, %v2287
      %v2289 = vrot.slane %v2287, 4
      %v2290 = vrot.slane %v352, 5
      %v2291 = vsel %vm2200, %v2289, %v2290
      %v2292 = vrot.slane %v353, 5
      %v2293 = vrot.slane %v2292, 4
      %v2294 = vrot.slane %v354, 5
      %v2295 = vsel %vm2200, %v2293, %v2294
      %v2296 = vrot.slane %v2294, 4
      %v2297 = vrot.slane %v355, 5
      %v2298 = vsel %vm2200, %v2296, %v2297
      %v2299 = vrot.slane %v356, 5
      %v2300 = vrot.slane %v2299, 4
      %v2301 = vrot.slane %v357, 5
      %v2302 = vsel %vm2200, %v2300, %v2301
      %v2303 = vrot.slane %v2301, 4
      %v2304 = vrot.slane %v358, 5
      %v2305 = vsel %vm2200, %v2303, %v2304
      %v2306 = vrot.slane %v359, 5
      %v2307 = vrot.slane %v2306, 4
      %v2308 = vrot.slane %v360, 5
      %v2309 = vsel %vm2200, %v2307, %v2308
      %v2310 = vrot.slane %v2308, 4
      %v2311 = vrot.slane %v361, 5
      %v2312 = vsel %vm2200, %v2310, %v2311
      %v2313 = vrot.slane %v362, 5
      %v2314 = vrot.slane %v2313, 4
      %v2315 = vrot.slane %v363, 5
      %v2316 = vsel %vm2200, %v2314, %v2315
      %v2317 = vrot.slane %v2315, 4
      %v2318 = vrot.slane %v364, 5
      %v2319 = vsel %vm2200, %v2317, %v2318
      %v2320 = vrot.slane %v365, 5
      %v2321 = vrot.slane %v2320, 4
      %v2322 = vrot.slane %v366, 5
      %v2323 = vsel %vm2200, %v2321, %v2322
      %v2324 = vrot.slane %v2322, 4
      %v2325 = vrot.slane %v367, 5
      %v2326 = vsel %vm2200, %v2324, %v2325
      %s2327 = scalar_lea.vmem [#allocation2], 4
      %v2328 = vld [vmem:[%s2327] sm:$0x3]
      %v2329 = vunpack.c.l.b16 %v2204
      %v2330 = vunpack.c.l.b16 %v2207
      %v2331 = vunpack.c.l.b16 %v2211
      %v2332 = vunpack.c.l.b16 %v2214
      %v2333 = vunpack.c.l.b16 %v2218
      %v2334 = vunpack.c.l.b16 %v2221
      %v2335 = vunpack.c.l.b16 %v2225
      %v2336 = vunpack.c.l.b16 %v2228
      %v2337 = vunpack.c.l.b16 %v2232
      %v2338 = vunpack.c.l.b16 %v2235
      %v2339 = vunpack.c.l.b16 %v2239
      %v2340 = vunpack.c.l.b16 %v2242
      %v2341 = vunpack.c.l.b16 %v2246
      %v2342 = vunpack.c.l.b16 %v2249
      %v2343 = vunpack.c.l.b16 %v2253
      %v2344 = vunpack.c.l.b16 %v2256
      %v2345 = vunpack.c.l.b16 %v2260
      %v2346 = vunpack.c.l.b16 %v2263
      %v2347 = vunpack.c.l.b16 %v2267
      %v2348 = vunpack.c.l.b16 %v2270
      %v2349 = vunpack.c.l.b16 %v2274
      %v2350 = vunpack.c.l.b16 %v2277
      %v2351 = vunpack.c.l.b16 %v2281
      %v2352 = vunpack.c.l.b16 %v2284
      %v2353 = vunpack.c.l.b16 %v2288
      %v2354 = vunpack.c.l.b16 %v2291
      %v2355 = vunpack.c.l.b16 %v2295
      %v2356 = vunpack.c.l.b16 %v2298
      %v2357 = vunpack.c.l.b16 %v2302
      %v2358 = vunpack.c.l.b16 %v2305
      %v2359 = vunpack.c.l.b16 %v2309
      %v2360 = vunpack.c.l.b16 %v2312
      %v2361 = vpack.c.b16 %v2330, %v2329
      %v2362 = vpack.c.b16 %v2332, %v2331
      %v2363 = vpack.c.b16 %v2334, %v2333
      %v2364 = vpack.c.b16 %v2336, %v2335
      %v2365 = vpack.c.b16 %v2338, %v2337
      %v2366 = vpack.c.b16 %v2340, %v2339
      %v2367 = vpack.c.b16 %v2342, %v2341
      %v2368 = vpack.c.b16 %v2344, %v2343
      %v2369 = vpack.c.b16 %v2346, %v2345
      %v2370 = vpack.c.b16 %v2348, %v2347
      %v2371 = vpack.c.b16 %v2350, %v2349
      %v2372 = vpack.c.b16 %v2352, %v2351
      %v2373 = vpack.c.b16 %v2354, %v2353
      %v2374 = vpack.c.b16 %v2356, %v2355
      %v2375 = vpack.c.b16 %v2358, %v2357
      %v2376 = vpack.c.b16 %v2360, %v2359
      %v2378 = vsel %vm451, %v2361, 0
      %v2381 = vsel %vm451, %v2362, 0
      %v2384 = vsel %vm451, %v2363, 0
      %v2387 = vsel %vm451, %v2364, 0
      %v2390 = vsel %vm451, %v2365, 0
      %v2393 = vsel %vm451, %v2366, 0
      %v2396 = vsel %vm451, %v2367, 0
      %v2399 = vsel %vm451, %v2368, 0
      %v2402 = vsel %vm451, %v2369, 0
      %v2405 = vsel %vm451, %v2370, 0
      %v2408 = vsel %vm451, %v2371, 0
      %v2411 = vsel %vm451, %v2372, 0
      %v2414 = vsel %vm451, %v2373, 0
      %v2417 = vsel %vm451, %v2374, 0
      %v2420 = vsel %vm451, %v2375, 0
      %v2423 = vsel %vm451, %v2376, 0
      %v2426 = vsel %vm500, %v2328, 0
      %2428 = vmatprep.subr.bf16.mxu0 0
      %2429 = vmatpush1.bf16.msra.mxu0 %v2426
      %2430 = vmatprep.subr.bf16.mxu0 0
      %2431 = vmatpush1.bf16.msra.mxu0 0
      %2432 = vmatprep.subr.bf16.mxu0 0
      %2433 = vmatpush1.bf16.msra.mxu0 0
      %2434 = vmatprep.subr.bf16.mxu0 0
      %2435 = vmatpush1.bf16.msra.mxu0 0
      %2436 = vmatprep.subr.bf16.mxu0 0
      %2437 = vmatpush1.bf16.msra.mxu0 0
      %2438 = vmatprep.subr.bf16.mxu0 0
      %2439 = vmatpush1.bf16.msra.mxu0 0
      %2440 = vmatprep.subr.bf16.mxu0 0
      %2441 = vmatpush1.bf16.msra.mxu0 0
      %2442 = vmatprep.subr.bf16.mxu0 0
      %2443 = vmatpush1.bf16.msra.mxu0 0
      %2444 = vmatprep.subr.bf16.mxu0 0
      %2445 = vmatpush1.bf16.msra.mxu0 0
      %2446 = vmatprep.subr.bf16.mxu0 0
      %2447 = vmatpush1.bf16.msra.mxu0 0
      %2448 = vmatprep.subr.bf16.mxu0 0
      %2449 = vmatpush1.bf16.msra.mxu0 0
      %2450 = vmatprep.subr.bf16.mxu0 0
      %2451 = vmatpush1.bf16.msra.mxu0 0
      %2452 = vmatprep.subr.bf16.mxu0 0
      %2453 = vmatpush1.bf16.msra.mxu0 0
      %2454 = vmatprep.subr.bf16.mxu0 0
      %2455 = vmatpush1.bf16.msra.mxu0 0
      %2456 = vmatprep.subr.bf16.mxu0 0
      %2457 = vmatpush1.bf16.msra.mxu0 0
      %2458 = vmatprep.subr.bf16.mxu0 0
      %2459 = vmatpush1.bf16.msra.mxu0 0
      %2460 = vmatprep.mubr.bf16.mxu0 0
      %2461 = vmatmul.mubr.bf16.gmra.mrb[0].mxu0 %v2378
      %v2462 = vpop.f32.mrb[0].mxu0
      %v2463 = vadd.f32 0.0, %v2462
      %v2464 = vpop.f32.mrb[0].mxu0
      %v2465 = vpop.f32.mrb[0].mxu0
      %v2466 = vadd.f32 0.0, %v2465
      %v2467 = vpop.f32.mrb[0].mxu0
      %2468 = vmatprep.mubr.bf16.mxu0 0
      %2469 = vmatmul.mubr.bf16.gmra.mrb[0].mxu0 %v2381
      %v2470 = vpop.f32.mrb[0].mxu0
      %v2471 = vadd.f32 0.0, %v2470
      %v2472 = vpop.f32.mrb[0].mxu0
      %v2473 = vpop.f32.mrb[0].mxu0
      %v2474 = vadd.f32 0.0, %v2473
      %v2475 = vpop.f32.mrb[0].mxu0
      %2476 = vmatprep.mubr.bf16.mxu0 0
      %2477 = vmatmul.mubr.bf16.gmra.mrb[0].mxu0 %v2384
      %v2478 = vpop.f32.mrb[0].mxu0
      %v2479 = vadd.f32 0.0, %v2478
      %v2480 = vpop.f32.mrb[0].mxu0
      %v2481 = vpop.f32.mrb[0].mxu0
      %v2482 = vadd.f32 0.0, %v2481
      %v2483 = vpop.f32.mrb[0].mxu0
      %2484 = vmatprep.mubr.bf16.mxu0 0
      %2485 = vmatmul.mubr.bf16.gmra.mrb[0].mxu0 %v2387
      %v2486 = vpop.f32.mrb[0].mxu0
      %v2487 = vadd.f32 0.0, %v2486
      %v2488 = vpop.f32.mrb[0].mxu0
      %v2489 = vpop.f32.mrb[0].mxu0
      %v2490 = vadd.f32 0.0, %v2489
      %v2491 = vpop.f32.mrb[0].mxu0
      %2492 = vmatprep.mubr.bf16.mxu0 0
      %2493 = vmatmul.mubr.bf16.gmra.mrb[0].mxu0 %v2390
      %v2494 = vpop.f32.mrb[0].mxu0
      %v2495 = vadd.f32 0.0, %v2494
      %v2496 = vpop.f32.mrb[0].mxu0
      %v2497 = vpop.f32.mrb[0].mxu0
      %v2498 = vadd.f32 0.0, %v2497
      %v2499 = vpop.f32.mrb[0].mxu0
      %2500 = vmatprep.mubr.bf16.mxu0 0
      %2501 = vmatmul.mubr.bf16.gmra.mrb[0].mxu0 %v2393
      %v2502 = vpop.f32.mrb[0].mxu0
      %v2503 = vadd.f32 0.0, %v2502
      %v2504 = vpop.f32.mrb[0].mxu0
      %v2505 = vpop.f32.mrb[0].mxu0
      %v2506 = vadd.f32 0.0, %v2505
      %v2507 = vpop.f32.mrb[0].mxu0
      %2508 = vmatprep.mubr.bf16.mxu0 0
      %2509 = vmatmul.mubr.bf16.gmra.mrb[0].mxu0 %v2396
      %v2510 = vpop.f32.mrb[0].mxu0
      %v2511 = vadd.f32 0.0, %v2510
      %v2512 = vpop.f32.mrb[0].mxu0
      %v2513 = vpop.f32.mrb[0].mxu0
      %v2514 = vadd.f32 0.0, %v2513
      %v2515 = vpop.f32.mrb[0].mxu0
      %2516 = vmatprep.mubr.bf16.mxu0 0
      %2517 = vmatmul.mubr.bf16.gmra.mrb[0].mxu0 %v2399
      %v2518 = vpop.f32.mrb[0].mxu0
      %v2519 = vadd.f32 0.0, %v2518
      %v2520 = vpop.f32.mrb[0].mxu0
      %v2521 = vpop.f32.mrb[0].mxu0
      %v2522 = vadd.f32 0.0, %v2521
      %v2523 = vpop.f32.mrb[0].mxu0
      %2524 = vmatprep.mubr.bf16.mxu0 0
      %2525 = vmatmul.mubr.bf16.gmra.mrb[0].mxu0 %v2402
      %v2526 = vpop.f32.mrb[0].mxu0
      %v2527 = vadd.f32 0.0, %v2526
      %v2528 = vpop.f32.mrb[0].mxu0
      %v2529 = vpop.f32.mrb[0].mxu0
      %v2530 = vadd.f32 0.0, %v2529
      %v2531 = vpop.f32.mrb[0].mxu0
      %2532 = vmatprep.mubr.bf16.mxu0 0
      %2533 = vmatmul.mubr.bf16.gmra.mrb[0].mxu0 %v2405
      %v2534 = vpop.f32.mrb[0].mxu0
      %v2535 = vadd.f32 0.0, %v2534
      %v2536 = vpop.f32.mrb[0].mxu0
      %v2537 = vpop.f32.mrb[0].mxu0
      %v2538 = vadd.f32 0.0, %v2537
      %v2539 = vpop.f32.mrb[0].mxu0
      %2540 = vmatprep.mubr.bf16.mxu0 0
      %2541 = vmatmul.mubr.bf16.gmra.mrb[0].mxu0 %v2408
      %v2542 = vpop.f32.mrb[0].mxu0
      %v2543 = vadd.f32 0.0, %v2542
      %v2544 = vpop.f32.mrb[0].mxu0
      %v2545 = vpop.f32.mrb[0].mxu0
      %v2546 = vadd.f32 0.0, %v2545
      %v2547 = vpop.f32.mrb[0].mxu0
      %2548 = vmatprep.mubr.bf16.mxu0 0
      %2549 = vmatmul.mubr.bf16.gmra.mrb[0].mxu0 %v2411
      %v2550 = vpop.f32.mrb[0].mxu0
      %v2551 = vadd.f32 0.0, %v2550
      %v2552 = vpop.f32.mrb[0].mxu0
      %v2553 = vpop.f32.mrb[0].mxu0
      %v2554 = vadd.f32 0.0, %v2553
      %v2555 = vpop.f32.mrb[0].mxu0
      %2556 = vmatprep.mubr.bf16.mxu0 0
      %2557 = vmatmul.mubr.bf16.gmra.mrb[0].mxu0 %v2414
      %v2558 = vpop.f32.mrb[0].mxu0
      %v2559 = vadd.f32 0.0, %v2558
      %v2560 = vpop.f32.mrb[0].mxu0
      %v2561 = vpop.f32.mrb[0].mxu0
      %v2562 = vadd.f32 0.0, %v2561
      %v2563 = vpop.f32.mrb[0].mxu0
      %2564 = vmatprep.mubr.bf16.mxu0 0
      %2565 = vmatmul.mubr.bf16.gmra.mrb[0].mxu0 %v2417
      %v2566 = vpop.f32.mrb[0].mxu0
      %v2567 = vadd.f32 0.0, %v2566
      %v2568 = vpop.f32.mrb[0].mxu0
      %v2569 = vpop.f32.mrb[0].mxu0
      %v2570 = vadd.f32 0.0, %v2569
      %v2571 = vpop.f32.mrb[0].mxu0
      %2572 = vmatprep.mubr.bf16.mxu0 0
      %2573 = vmatmul.mubr.bf16.gmra.mrb[0].mxu0 %v2420
      %v2574 = vpop.f32.mrb[0].mxu0
      %v2575 = vadd.f32 0.0, %v2574
      %v2576 = vpop.f32.mrb[0].mxu0
      %v2577 = vpop.f32.mrb[0].mxu0
      %v2578 = vadd.f32 0.0, %v2577
      %v2579 = vpop.f32.mrb[0].mxu0
      %2580 = vmatprep.mubr.bf16.mxu0 0
      %2581 = vmatmul.mubr.bf16.gmra.mrb[0].mxu0 %v2423
      %v2582 = vpop.f32.mrb[0].mxu0
      %v2583 = vadd.f32 0.0, %v2582
      %v2584 = vpop.f32.mrb[0].mxu0
      %v2585 = vpop.f32.mrb[0].mxu0
      %v2586 = vadd.f32 0.0, %v2585
      %v2587 = vpop.f32.mrb[0].mxu0
      %2588 = vdwg.mxu0
      %v2589 = vadd.f32 %v2148, %v2463
      %v2590 = vadd.f32 %v2149, %v2466
      %v2591 = vadd.f32 %v2150, %v2471
      %v2592 = vadd.f32 %v2151, %v2474
      %v2593 = vadd.f32 %v2152, %v2479
      %v2594 = vadd.f32 %v2153, %v2482
      %v2595 = vadd.f32 %v2154, %v2487
      %v2596 = vadd.f32 %v2155, %v2490
      %v2597 = vadd.f32 %v2156, %v2495
      %v2598 = vadd.f32 %v2157, %v2498
      %v2599 = vadd.f32 %v2158, %v2503
      %v2600 = vadd.f32 %v2159, %v2506
      %v2601 = vadd.f32 %v2160, %v2511
      %v2602 = vadd.f32 %v2161, %v2514
      %v2603 = vadd.f32 %v2162, %v2519
      %v2604 = vadd.f32 %v2163, %v2522
      %v2605 = vadd.f32 %v2164, %v2527
      %v2606 = vadd.f32 %v2165, %v2530
      %v2607 = vadd.f32 %v2166, %v2535
      %v2608 = vadd.f32 %v2167, %v2538
      %v2609 = vadd.f32 %v2168, %v2543
      %v2610 = vadd.f32 %v2169, %v2546
      %v2611 = vadd.f32 %v2170, %v2551
      %v2612 = vadd.f32 %v2171, %v2554
      %v2613 = vadd.f32 %v2172, %v2559
      %v2614 = vadd.f32 %v2173, %v2562
      %v2615 = vadd.f32 %v2174, %v2567
      %v2616 = vadd.f32 %v2175, %v2570
      %v2617 = vadd.f32 %v2176, %v2575
      %v2618 = vadd.f32 %v2177, %v2578
      %v2619 = vadd.f32 %v2178, %v2583
      %v2620 = vadd.f32 %v2179, %v2586
      %s2621 = scalar_lea.vmem [#allocation2], 10
      %v2622 = vld [vmem:[%s2621] sm:$0x3]
      %v2623 = vunpack.c.l.b16 %v2316
      %v2624 = vunpack.c.l.b16 %v2319
      %v2625 = vpack.c.b16 %v2624, %v2623
      %v2627 = vsel %vm451, %v2625, 0
      %v2630 = vsel %vm500, %v2622, 0
      %2632 = vmatprep.subr.bf16.mxu0 0
      %2633 = vmatpush1.bf16.msra.mxu0 %v2630
      %2634 = vmatprep.subr.bf16.mxu0 0
      %2635 = vmatpush1.bf16.msra.mxu0 0
      %2636 = vmatprep.subr.bf16.mxu0 0
      %2637 = vmatpush1.bf16.msra.mxu0 0
      %2638 = vmatprep.subr.bf16.mxu0 0
      %2639 = vmatpush1.bf16.msra.mxu0 0
      %2640 = vmatprep.subr.bf16.mxu0 0
      %2641 = vmatpush1.bf16.msra.mxu0 0
      %2642 = vmatprep.subr.bf16.mxu0 0
      %2643 = vmatpush1.bf16.msra.mxu0 0
      %2644 = vmatprep.subr.bf16.mxu0 0
      %2645 = vmatpush1.bf16.msra.mxu0 0
      %2646 = vmatprep.subr.bf16.mxu0 0
      %2647 = vmatpush1.bf16.msra.mxu0 0
      %2648 = vmatprep.subr.bf16.mxu0 0
      %2649 = vmatpush1.bf16.msra.mxu0 0
      %2650 = vmatprep.subr.bf16.mxu0 0
      %2651 = vmatpush1.bf16.msra.mxu0 0
      %2652 = vmatprep.subr.bf16.mxu0 0
      %2653 = vmatpush1.bf16.msra.mxu0 0
      %2654 = vmatprep.subr.bf16.mxu0 0
      %2655 = vmatpush1.bf16.msra.mxu0 0
      %2656 = vmatprep.subr.bf16.mxu0 0
      %2657 = vmatpush1.bf16.msra.mxu0 0
      %2658 = vmatprep.subr.bf16.mxu0 0
      %2659 = vmatpush1.bf16.msra.mxu0 0
      %2660 = vmatprep.subr.bf16.mxu0 0
      %2661 = vmatpush1.bf16.msra.mxu0 0
      %2662 = vmatprep.subr.bf16.mxu0 0
      %2663 = vmatpush1.bf16.msra.mxu0 0
      %2664 = vmatprep.mubr.bf16.mxu0 0
      %2665 = vmatmul.mubr.bf16.gmra.mrb[0].mxu0 %v2381
      %v2666 = vpop.f32.mrb[0].mxu0
      %v2667 = vadd.f32 0.0, %v2666
      %v2668 = vpop.f32.mrb[0].mxu0
      %v2669 = vpop.f32.mrb[0].mxu0
      %v2670 = vadd.f32 0.0, %v2669
      %v2671 = vpop.f32.mrb[0].mxu0
      %2672 = vmatprep.mubr.bf16.mxu0 0
      %2673 = vmatmul.mubr.bf16.gmra.mrb[0].mxu0 %v2384
      %v2674 = vpop.f32.mrb[0].mxu0
      %v2675 = vadd.f32 0.0, %v2674
      %v2676 = vpop.f32.mrb[0].mxu0
      %v2677 = vpop.f32.mrb[0].mxu0
      %v2678 = vadd.f32 0.0, %v2677
      %v2679 = vpop.f32.mrb[0].mxu0
      %2680 = vmatprep.mubr.bf16.mxu0 0
      %2681 = vmatmul.mubr.bf16.gmra.mrb[0].mxu0 %v2387
      %v2682 = vpop.f32.mrb[0].mxu0
      %v2683 = vadd.f32 0.0, %v2682
      %v2684 = vpop.f32.mrb[0].mxu0
      %v2685 = vpop.f32.mrb[0].mxu0
      %v2686 = vadd.f32 0.0, %v2685
      %v2687 = vpop.f32.mrb[0].mxu0
      %2688 = vmatprep.mubr.bf16.mxu0 0
      %2689 = vmatmul.mubr.bf16.gmra.mrb[0].mxu0 %v2390
      %v2690 = vpop.f32.mrb[0].mxu0
      %v2691 = vadd.f32 0.0, %v2690
      %v2692 = vpop.f32.mrb[0].mxu0
      %v2693 = vpop.f32.mrb[0].mxu0
      %v2694 = vadd.f32 0.0, %v2693
      %v2695 = vpop.f32.mrb[0].mxu0
      %2696 = vmatprep.mubr.bf16.mxu0 0
      %2697 = vmatmul.mubr.bf16.gmra.mrb[0].mxu0 %v2393
      %v2698 = vpop.f32.mrb[0].mxu0
      %v2699 = vadd.f32 0.0, %v2698
      %v2700 = vpop.f32.mrb[0].mxu0
      %v2701 = vpop.f32.mrb[0].mxu0
      %v2702 = vadd.f32 0.0, %v2701
      %v2703 = vpop.f32.mrb[0].mxu0
      %2704 = vmatprep.mubr.bf16.mxu0 0
      %2705 = vmatmul.mubr.bf16.gmra.mrb[0].mxu0 %v2396
      %v2706 = vpop.f32.mrb[0].mxu0
      %v2707 = vadd.f32 0.0, %v2706
      %v2708 = vpop.f32.mrb[0].mxu0
      %v2709 = vpop.f32.mrb[0].mxu0
      %v2710 = vadd.f32 0.0, %v2709
      %v2711 = vpop.f32.mrb[0].mxu0
      %2712 = vmatprep.mubr.bf16.mxu0 0
      %2713 = vmatmul.mubr.bf16.gmra.mrb[0].mxu0 %v2399
      %v2714 = vpop.f32.mrb[0].mxu0
      %v2715 = vadd.f32 0.0, %v2714
      %v2716 = vpop.f32.mrb[0].mxu0
      %v2717 = vpop.f32.mrb[0].mxu0
      %v2718 = vadd.f32 0.0, %v2717
      %v2719 = vpop.f32.mrb[0].mxu0
      %2720 = vmatprep.mubr.bf16.mxu0 0
      %2721 = vmatmul.mubr.bf16.gmra.mrb[0].mxu0 %v2402
      %v2722 = vpop.f32.mrb[0].mxu0
      %v2723 = vadd.f32 0.0, %v2722
      %v2724 = vpop.f32.mrb[0].mxu0
      %v2725 = vpop.f32.mrb[0].mxu0
      %v2726 = vadd.f32 0.0, %v2725
      %v2727 = vpop.f32.mrb[0].mxu0
      %2728 = vmatprep.mubr.bf16.mxu0 0
      %2729 = vmatmul.mubr.bf16.gmra.mrb[0].mxu0 %v2405
      %v2730 = vpop.f32.mrb[0].mxu0
      %v2731 = vadd.f32 0.0, %v2730
      %v2732 = vpop.f32.mrb[0].mxu0
      %v2733 = vpop.f32.mrb[0].mxu0
      %v2734 = vadd.f32 0.0, %v2733
      %v2735 = vpop.f32.mrb[0].mxu0
      %2736 = vmatprep.mubr.bf16.mxu0 0
      %2737 = vmatmul.mubr.bf16.gmra.mrb[0].mxu0 %v2408
      %v2738 = vpop.f32.mrb[0].mxu0
      %v2739 = vadd.f32 0.0, %v2738
      %v2740 = vpop.f32.mrb[0].mxu0
      %v2741 = vpop.f32.mrb[0].mxu0
      %v2742 = vadd.f32 0.0, %v2741
      %v2743 = vpop.f32.mrb[0].mxu0
      %2744 = vmatprep.mubr.bf16.mxu0 0
      %2745 = vmatmul.mubr.bf16.gmra.mrb[0].mxu0 %v2411
      %v2746 = vpop.f32.mrb[0].mxu0
      %v2747 = vadd.f32 0.0, %v2746
      %v2748 = vpop.f32.mrb[0].mxu0
      %v2749 = vpop.f32.mrb[0].mxu0
      %v2750 = vadd.f32 0.0, %v2749
      %v2751 = vpop.f32.mrb[0].mxu0
      %2752 = vmatprep.mubr.bf16.mxu0 0
      %2753 = vmatmul.mubr.bf16.gmra.mrb[0].mxu0 %v2414
      %v2754 = vpop.f32.mrb[0].mxu0
      %v2755 = vadd.f32 0.0, %v2754
      %v2756 = vpop.f32.mrb[0].mxu0
      %v2757 = vpop.f32.mrb[0].mxu0
      %v2758 = vadd.f32 0.0, %v2757
      %v2759 = vpop.f32.mrb[0].mxu0
      %2760 = vmatprep.mubr.bf16.mxu0 0
      %2761 = vmatmul.mubr.bf16.gmra.mrb[0].mxu0 %v2417
      %v2762 = vpop.f32.mrb[0].mxu0
      %v2763 = vadd.f32 0.0, %v2762
      %v2764 = vpop.f32.mrb[0].mxu0
      %v2765 = vpop.f32.mrb[0].mxu0
      %v2766 = vadd.f32 0.0, %v2765
      %v2767 = vpop.f32.mrb[0].mxu0
      %2768 = vmatprep.mubr.bf16.mxu0 0
      %2769 = vmatmul.mubr.bf16.gmra.mrb[0].mxu0 %v2420
      %v2770 = vpop.f32.mrb[0].mxu0
      %v2771 = vadd.f32 0.0, %v2770
      %v2772 = vpop.f32.mrb[0].mxu0
      %v2773 = vpop.f32.mrb[0].mxu0
      %v2774 = vadd.f32 0.0, %v2773
      %v2775 = vpop.f32.mrb[0].mxu0
      %2776 = vmatprep.mubr.bf16.mxu0 0
      %2777 = vmatmul.mubr.bf16.gmra.mrb[0].mxu0 %v2423
      %v2778 = vpop.f32.mrb[0].mxu0
      %v2779 = vadd.f32 0.0, %v2778
      %v2780 = vpop.f32.mrb[0].mxu0
      %v2781 = vpop.f32.mrb[0].mxu0
      %v2782 = vadd.f32 0.0, %v2781
      %v2783 = vpop.f32.mrb[0].mxu0
      %2784 = vmatprep.mubr.bf16.mxu0 0
      %2785 = vmatmul.mubr.bf16.gmra.mrb[0].mxu0 %v2627
      %v2786 = vpop.f32.mrb[0].mxu0
      %v2787 = vadd.f32 0.0, %v2786
      %v2788 = vpop.f32.mrb[0].mxu0
      %v2789 = vpop.f32.mrb[0].mxu0
      %v2790 = vadd.f32 0.0, %v2789
      %v2791 = vpop.f32.mrb[0].mxu0
      %2792 = vdwg.mxu0
      %v2793 = vadd.f32 %v2589, %v2667
      %v2794 = vadd.f32 %v2590, %v2670
      %v2795 = vadd.f32 %v2591, %v2675
      %v2796 = vadd.f32 %v2592, %v2678
      %v2797 = vadd.f32 %v2593, %v2683
      %v2798 = vadd.f32 %v2594, %v2686
      %v2799 = vadd.f32 %v2595, %v2691
      %v2800 = vadd.f32 %v2596, %v2694
      %v2801 = vadd.f32 %v2597, %v2699
      %v2802 = vadd.f32 %v2598, %v2702
      %v2803 = vadd.f32 %v2599, %v2707
      %v2804 = vadd.f32 %v2600, %v2710
      %v2805 = vadd.f32 %v2601, %v2715
      %v2806 = vadd.f32 %v2602, %v2718
      %v2807 = vadd.f32 %v2603, %v2723
      %v2808 = vadd.f32 %v2604, %v2726
      %v2809 = vadd.f32 %v2605, %v2731
      %v2810 = vadd.f32 %v2606, %v2734
      %v2811 = vadd.f32 %v2607, %v2739
      %v2812 = vadd.f32 %v2608, %v2742
      %v2813 = vadd.f32 %v2609, %v2747
      %v2814 = vadd.f32 %v2610, %v2750
      %v2815 = vadd.f32 %v2611, %v2755
      %v2816 = vadd.f32 %v2612, %v2758
      %v2817 = vadd.f32 %v2613, %v2763
      %v2818 = vadd.f32 %v2614, %v2766
      %v2819 = vadd.f32 %v2615, %v2771
      %v2820 = vadd.f32 %v2616, %v2774
      %v2821 = vadd.f32 %v2617, %v2779
      %v2822 = vadd.f32 %v2618, %v2782
      %v2823 = vadd.f32 %v2619, %v2787
      %v2824 = vadd.f32 %v2620, %v2790
      %s2825 = scalar_lea.vmem [#allocation2], 16
      %v2826 = vld [vmem:[%s2825] sm:$0x3]
      %v2827 = vunpack.c.l.b16 %v2323
      %v2828 = vunpack.c.l.b16 %v2326
      %v2829 = vpack.c.b16 %v2828, %v2827
      %v2831 = vsel %vm451, %v2829, 0
      %v2834 = vsel %vm500, %v2826, 0
      %2836 = vmatprep.subr.bf16.mxu0 0
      %2837 = vmatpush1.bf16.msra.mxu0 %v2834
      %2838 = vmatprep.subr.bf16.mxu0 0
      %2839 = vmatpush1.bf16.msra.mxu0 0
      %2840 = vmatprep.subr.bf16.mxu0 0
      %2841 = vmatpush1.bf16.msra.mxu0 0
      %2842 = vmatprep.subr.bf16.mxu0 0
      %2843 = vmatpush1.bf16.msra.mxu0 0
      %2844 = vmatprep.subr.bf16.mxu0 0
      %2845 = vmatpush1.bf16.msra.mxu0 0
      %2846 = vmatprep.subr.bf16.mxu0 0
      %2847 = vmatpush1.bf16.msra.mxu0 0
      %2848 = vmatprep.subr.bf16.mxu0 0
      %2849 = vmatpush1.bf16.msra.mxu0 0
      %2850 = vmatprep.subr.bf16.mxu0 0
      %2851 = vmatpush1.bf16.msra.mxu0 0
      %2852 = vmatprep.subr.bf16.mxu0 0
      %2853 = vmatpush1.bf16.msra.mxu0 0
      %2854 = vmatprep.subr.bf16.mxu0 0
      %2855 = vmatpush1.bf16.msra.mxu0 0
      %2856 = vmatprep.subr.bf16.mxu0 0
      %2857 = vmatpush1.bf16.msra.mxu0 0
      %2858 = vmatprep.subr.bf16.mxu0 0
      %2859 = vmatpush1.bf16.msra.mxu0 0
      %2860 = vmatprep.subr.bf16.mxu0 0
      %2861 = vmatpush1.bf16.msra.mxu0 0
      %2862 = vmatprep.subr.bf16.mxu0 0
      %2863 = vmatpush1.bf16.msra.mxu0 0
      %2864 = vmatprep.subr.bf16.mxu0 0
      %2865 = vmatpush1.bf16.msra.mxu0 0
      %2866 = vmatprep.subr.bf16.mxu0 0
      %2867 = vmatpush1.bf16.msra.mxu0 0
      %2868 = vmatprep.mubr.bf16.mxu0 0
      %2869 = vmatmul.mubr.bf16.gmra.mrb[0].mxu0 %v2384
      %v2870 = vpop.f32.mrb[0].mxu0
      %v2871 = vadd.f32 0.0, %v2870
      %v2872 = vpop.f32.mrb[0].mxu0
      %v2873 = vpop.f32.mrb[0].mxu0
      %v2874 = vadd.f32 0.0, %v2873
      %v2875 = vpop.f32.mrb[0].mxu0
      %2876 = vmatprep.mubr.bf16.mxu0 0
      %2877 = vmatmul.mubr.bf16.gmra.mrb[0].mxu0 %v2387
      %v2878 = vpop.f32.mrb[0].mxu0
      %v2879 = vadd.f32 0.0, %v2878
      %v2880 = vpop.f32.mrb[0].mxu0
      %v2881 = vpop.f32.mrb[0].mxu0
      %v2882 = vadd.f32 0.0, %v2881
      %v2883 = vpop.f32.mrb[0].mxu0
      %2884 = vmatprep.mubr.bf16.mxu0 0
      %2885 = vmatmul.mubr.bf16.gmra.mrb[0].mxu0 %v2390
      %v2886 = vpop.f32.mrb[0].mxu0
      %v2887 = vadd.f32 0.0, %v2886
      %v2888 = vpop.f32.mrb[0].mxu0
      %v2889 = vpop.f32.mrb[0].mxu0
      %v2890 = vadd.f32 0.0, %v2889
      %v2891 = vpop.f32.mrb[0].mxu0
      %2892 = vmatprep.mubr.bf16.mxu0 0
      %2893 = vmatmul.mubr.bf16.gmra.mrb[0].mxu0 %v2393
      %v2894 = vpop.f32.mrb[0].mxu0
      %v2895 = vadd.f32 0.0, %v2894
      %v2896 = vpop.f32.mrb[0].mxu0
      %v2897 = vpop.f32.mrb[0].mxu0
      %v2898 = vadd.f32 0.0, %v2897
      %v2899 = vpop.f32.mrb[0].mxu0
      %2900 = vmatprep.mubr.bf16.mxu0 0
      %2901 = vmatmul.mubr.bf16.gmra.mrb[0].mxu0 %v2396
      %v2902 = vpop.f32.mrb[0].mxu0
      %v2903 = vadd.f32 0.0, %v2902
      %v2904 = vpop.f32.mrb[0].mxu0
      %v2905 = vpop.f32.mrb[0].mxu0
      %v2906 = vadd.f32 0.0, %v2905
      %v2907 = vpop.f32.mrb[0].mxu0
      %2908 = vmatprep.mubr.bf16.mxu0 0
      %2909 = vmatmul.mubr.bf16.gmra.mrb[0].mxu0 %v2399
      %v2910 = vpop.f32.mrb[0].mxu0
      %v2911 = vadd.f32 0.0, %v2910
      %v2912 = vpop.f32.mrb[0].mxu0
      %v2913 = vpop.f32.mrb[0].mxu0
      %v2914 = vadd.f32 0.0, %v2913
      %v2915 = vpop.f32.mrb[0].mxu0
      %2916 = vmatprep.mubr.bf16.mxu0 0
      %2917 = vmatmul.mubr.bf16.gmra.mrb[0].mxu0 %v2402
      %v2918 = vpop.f32.mrb[0].mxu0
      %v2919 = vadd.f32 0.0, %v2918
      %v2920 = vpop.f32.mrb[0].mxu0
      %v2921 = vpop.f32.mrb[0].mxu0
      %v2922 = vadd.f32 0.0, %v2921
      %v2923 = vpop.f32.mrb[0].mxu0
      %2924 = vmatprep.mubr.bf16.mxu0 0
      %2925 = vmatmul.mubr.bf16.gmra.mrb[0].mxu0 %v2405
      %v2926 = vpop.f32.mrb[0].mxu0
      %v2927 = vadd.f32 0.0, %v2926
      %v2928 = vpop.f32.mrb[0].mxu0
      %v2929 = vpop.f32.mrb[0].mxu0
      %v2930 = vadd.f32 0.0, %v2929
      %v2931 = vpop.f32.mrb[0].mxu0
      %2932 = vmatprep.mubr.bf16.mxu0 0
      %2933 = vmatmul.mubr.bf16.gmra.mrb[0].mxu0 %v2408
      %v2934 = vpop.f32.mrb[0].mxu0
      %v2935 = vadd.f32 0.0, %v2934
      %v2936 = vpop.f32.mrb[0].mxu0
      %v2937 = vpop.f32.mrb[0].mxu0
      %v2938 = vadd.f32 0.0, %v2937
      %v2939 = vpop.f32.mrb[0].mxu0
      %2940 = vmatprep.mubr.bf16.mxu0 0
      %2941 = vmatmul.mubr.bf16.gmra.mrb[0].mxu0 %v2411
      %v2942 = vpop.f32.mrb[0].mxu0
      %v2943 = vadd.f32 0.0, %v2942
      %v2944 = vpop.f32.mrb[0].mxu0
      %v2945 = vpop.f32.mrb[0].mxu0
      %v2946 = vadd.f32 0.0, %v2945
      %v2947 = vpop.f32.mrb[0].mxu0
      %2948 = vmatprep.mubr.bf16.mxu0 0
      %2949 = vmatmul.mubr.bf16.gmra.mrb[0].mxu0 %v2414
      %v2950 = vpop.f32.mrb[0].mxu0
      %v2951 = vadd.f32 0.0, %v2950
      %v2952 = vpop.f32.mrb[0].mxu0
      %v2953 = vpop.f32.mrb[0].mxu0
      %v2954 = vadd.f32 0.0, %v2953
      %v2955 = vpop.f32.mrb[0].mxu0
      %2956 = vmatprep.mubr.bf16.mxu0 0
      %2957 = vmatmul.mubr.bf16.gmra.mrb[0].mxu0 %v2417
      %v2958 = vpop.f32.mrb[0].mxu0
      %v2959 = vadd.f32 0.0, %v2958
      %v2960 = vpop.f32.mrb[0].mxu0
      %v2961 = vpop.f32.mrb[0].mxu0
      %v2962 = vadd.f32 0.0, %v2961
      %v2963 = vpop.f32.mrb[0].mxu0
      %2964 = vmatprep.mubr.bf16.mxu0 0
      %2965 = vmatmul.mubr.bf16.gmra.mrb[0].mxu0 %v2420
      %v2966 = vpop.f32.mrb[0].mxu0
      %v2967 = vadd.f32 0.0, %v2966
      %v2968 = vpop.f32.mrb[0].mxu0
      %v2969 = vpop.f32.mrb[0].mxu0
      %v2970 = vadd.f32 0.0, %v2969
      %v2971 = vpop.f32.mrb[0].mxu0
      %2972 = vmatprep.mubr.bf16.mxu0 0
      %2973 = vmatmul.mubr.bf16.gmra.mrb[0].mxu0 %v2423
      %v2974 = vpop.f32.mrb[0].mxu0
      %v2975 = vadd.f32 0.0, %v2974
      %v2976 = vpop.f32.mrb[0].mxu0
      %v2977 = vpop.f32.mrb[0].mxu0
      %v2978 = vadd.f32 0.0, %v2977
      %v2979 = vpop.f32.mrb[0].mxu0
      %2980 = vmatprep.mubr.bf16.mxu0 0
      %2981 = vmatmul.mubr.bf16.gmra.mrb[0].mxu0 %v2627
      %v2982 = vpop.f32.mrb[0].mxu0
      %v2983 = vadd.f32 0.0, %v2982
      %v2984 = vpop.f32.mrb[0].mxu0
      %v2985 = vpop.f32.mrb[0].mxu0
      %v2986 = vadd.f32 0.0, %v2985
      %v2987 = vpop.f32.mrb[0].mxu0
      %2988 = vmatprep.mubr.bf16.mxu0 0
      %2989 = vmatmul.mubr.bf16.gmra.mrb[0].mxu0 %v2831
      %v2990 = vpop.f32.mrb[0].mxu0
      %v2991 = vadd.f32 0.0, %v2990
      %v2992 = vpop.f32.mrb[0].mxu0
      %v2993 = vpop.f32.mrb[0].mxu0
      %v2994 = vadd.f32 0.0, %v2993
      %v2995 = vpop.f32.mrb[0].mxu0
      %2996 = vdwg.mxu0
      %v2997 = vadd.f32 %v2793, %v2871
      %v2998 = vadd.f32 %v2794, %v2874
      %v2999 = vadd.f32 %v2795, %v2879
      %v3000 = vadd.f32 %v2796, %v2882
      %v3001 = vadd.f32 %v2797, %v2887
      %v3002 = vadd.f32 %v2798, %v2890
      %v3003 = vadd.f32 %v2799, %v2895
      %v3004 = vadd.f32 %v2800, %v2898
      %v3005 = vadd.f32 %v2801, %v2903
      %v3006 = vadd.f32 %v2802, %v2906
      %v3007 = vadd.f32 %v2803, %v2911
      %v3008 = vadd.f32 %v2804, %v2914
      %v3009 = vadd.f32 %v2805, %v2919
      %v3010 = vadd.f32 %v2806, %v2922
      %v3011 = vadd.f32 %v2807, %v2927
      %v3012 = vadd.f32 %v2808, %v2930
      %v3013 = vadd.f32 %v2809, %v2935
      %v3014 = vadd.f32 %v2810, %v2938
      %v3015 = vadd.f32 %v2811, %v2943
      %v3016 = vadd.f32 %v2812, %v2946
      %v3017 = vadd.f32 %v2813, %v2951
      %v3018 = vadd.f32 %v2814, %v2954
      %v3019 = vadd.f32 %v2815, %v2959
      %v3020 = vadd.f32 %v2816, %v2962
      %v3021 = vadd.f32 %v2817, %v2967
      %v3022 = vadd.f32 %v2818, %v2970
      %v3023 = vadd.f32 %v2819, %v2975
      %v3024 = vadd.f32 %v2820, %v2978
      %v3025 = vadd.f32 %v2821, %v2983
      %v3026 = vadd.f32 %v2822, %v2986
      %v3027 = vadd.f32 %v2823, %v2991
      %v3028 = vadd.f32 %v2824, %v2994
      %vm3029 = vcmask 64512
      %3030 = vst.msk [vmem:[%s210] sm:$0xff] %vm3029, %v2997
      %3031 = vst.msk [vmem:[%s210 + $0x8] sm:$0xff] %vm3029, %v2998
      %3032 = vst.msk [vmem:[%s210 + $0x10] sm:$0xff] %vm3029, %v2999
      %3033 = vst.msk [vmem:[%s210 + $0x18] sm:$0xff] %vm3029, %v3000
      %3034 = vst.msk [vmem:[%s210 + $0x20] sm:$0xff] %vm3029, %v3001
      %3035 = vst.msk [vmem:[%s210 + $0x28] sm:$0xff] %vm3029, %v3002
      %3036 = vst.msk [vmem:[%s210 + $0x30] sm:$0xff] %vm3029, %v3003
      %3037 = vst.msk [vmem:[%s210 + $0x38] sm:$0xff] %vm3029, %v3004
      %3038 = vst.msk [vmem:[%s210 + $0x40] sm:$0xff] %vm3029, %v3005
      %3039 = vst.msk [vmem:[%s210 + $0x48] sm:$0xff] %vm3029, %v3006
      %3040 = vst.msk [vmem:[%s210 + $0x50] sm:$0xff] %vm3029, %v3007
      %3041 = vst.msk [vmem:[%s210 + $0x58] sm:$0xff] %vm3029, %v3008
      %3042 = vst.msk [vmem:[%s210 + $0x60] sm:$0xff] %vm3029, %v3009
      %3043 = vst.msk [vmem:[%s210 + $0x68] sm:$0xff] %vm3029, %v3010
      %3044 = vst.msk [vmem:[%s210 + $0x70] sm:$0xff] %vm3029, %v3011
      %3045 = vst.msk [vmem:[%s210 + $0x78] sm:$0xff] %vm3029, %v3012
      %3046 = vst.msk [vmem:[%s210 + $0x80] sm:$0xff] %vm3029, %v3013
      %3047 = vst.msk [vmem:[%s210 + $0x88] sm:$0xff] %vm3029, %v3014
      %3048 = vst.msk [vmem:[%s210 + $0x90] sm:$0xff] %vm3029, %v3015
      %3049 = vst.msk [vmem:[%s210 + $0x98] sm:$0xff] %vm3029, %v3016
      %3050 = vst.msk [vmem:[%s210 + $0xa0] sm:$0xff] %vm3029, %v3017
      %3051 = vst.msk [vmem:[%s210 + $0xa8] sm:$0xff] %vm3029, %v3018
      %3052 = vst.msk [vmem:[%s210 + $0xb0] sm:$0xff] %vm3029, %v3019
      %3053 = vst.msk [vmem:[%s210 + $0xb8] sm:$0xff] %vm3029, %v3020
      %3054 = vst.msk [vmem:[%s210 + $0xc0] sm:$0xff] %vm3029, %v3021
      %3055 = vst.msk [vmem:[%s210 + $0xc8] sm:$0xff] %vm3029, %v3022
      %3056 = vst.msk [vmem:[%s210 + $0xd0] sm:$0xff] %vm3029, %v3023
      %3057 = vst.msk [vmem:[%s210 + $0xd8] sm:$0xff] %vm3029, %v3024
      %3058 = vst.msk [vmem:[%s210 + $0xe0] sm:$0xff] %vm3029, %v3025
      %3059 = vst.msk [vmem:[%s210 + $0xe8] sm:$0xff] %vm3029, %v3026
      %3060 = vst.msk [vmem:[%s210 + $0xf0] sm:$0xff] %vm3029, %v3027
      %3061 = vst.msk [vmem:[%s210 + $0xf8] sm:$0xff] %vm3029, %v3028
      %s3062 = sadd.s32 %s18, %s19
      %p3063 = scmp.lt.s32.totalorder %s3062, 1
      %s3064 = scalar_select %p3063, %s3062, 1
      %s3065 = smul.addr %s3064, 32
      %s3066 = smul.addr %s3065, 8
      %s3067 = scalar_lea.vmem %s3, %s3066
      // Predicated region
      $region37: #{tpu_custom_call.1} parent=31 // pred_check
        %p3068 = pneg %p121
      $region38: #{tpu_custom_call.1} parent=31 // pred_check_branch
        %3070 = sbr.rel (%p3068) target = $region40
      $region39: #{tpu_custom_call.1} parent=31 // pred_region
        %s3071 = sadd.s32 %s18, %s19
      $region40: #{tpu_custom_call.1} parent=31 // pred_fallthru
        _
    $region32: #{tpu_custom_call.1} parent=5 // pred_fallthru
      _
    %p3072 = scmp.le.s32.totalorder 2, %s9
    // Predicated region
    $region41: #{tpu_custom_call.1} parent=5 // pred_check
      %p3073 = pneg %p3072
    $region42: #{tpu_custom_call.1} parent=5 // pred_check_branch
      %3075 = sbr.rel (%p3073) target = $region44
    $region43: #{tpu_custom_call.1} parent=5 // pred_region
      %s3076 = ssub.s32 %s9, 2
      // Predicated region
      $region45: #{tpu_custom_call.1} parent=43 // pred_check
        %p3077 = pneg %p127
      $region46: #{tpu_custom_call.1} parent=43 // pred_check_branch
        %3079 = sbr.rel (%p3077) target = $region48
      $region47: #{tpu_custom_call.1} parent=43 // pred_region
        %s3080 = sadd.s32 %s20, %s21
        %p3081 = scmp.lt.s32.totalorder %s3080, 1
        %s3082 = scalar_select %p3081, %s3080, 1
        %s3083 = smul.addr %s3082, 32
        %s3084 = smul.addr %s3083, 8
        %s3085 = scalar_lea.vmem %s3, %s3084
      $region48: #{tpu_custom_call.1} parent=43 // pred_fallthru
        _
    $region44: #{tpu_custom_call.1} parent=5 // pred_fallthru
      _
  $region6: #{tpu_custom_call.1} parent=0 // loop_footer
    %s13 = sadd.s32 1, %s9
  $region7: #{tpu_custom_call.1} parent=0 // loop_footer_branch
    %8 = sbr.rel target = $region3
  $region8: #{tpu_custom_call.1} parent=0 // loop_exit
    _

</llo_original>
